<compile_context>
chip_gen: v7x
topology: tpu7x:2x2x1
jax: 0.10.0
libtpu: 0.0.40
codegen_flags: <defaults>
</compile_context>

<pallas_src>
import functools

import jax
import jax.numpy as jnp
from jax.experimental import pallas as pl
from jax.experimental.pallas import tpu as pltpu


def _rnn_scan_kernel(xp_ref, whh_ref, len_ref, out_ref, hid_ref, h_scr, *, tb):
    """Runs `tb` recurrence steps over one (Bb, tb, H) block.

    xp_ref  : (Bb, tb, H)  precomputed (x_t * mask_t) @ W_ih^T + (b_ih + b_hh)
    whh_ref : (H, H)       W_hh^T (resident; constant index_map)
    len_ref : (Bb, 1)      per-row sequence length (float32)
    out_ref : (Bb, tb, H)  per-step outputs (batch-first)
    hid_ref : (Bb, H)      final hidden h_{len-1} (written on last time block)
    h_scr   : (Bb, H) f32  hidden state carried across time blocks
    """
    ti = pl.program_id(1)

    @pl.when(ti == 0)
    def _():
        h_scr[...] = jnp.zeros_like(h_scr)

    h = h_scr[...]                                   # (Bb, H) f32
    whh = whh_ref[...].astype(jnp.float32)           # (H, H), hoisted load
    lens = len_ref[...].astype(jnp.float32)          # (Bb, 1)
    t_base = ti * tb                                 # traced int32 scalar

    # Static Python loop -> every ref index below is a compile-time constant.
    for i in range(tb):
        pre = (xp_ref[:, i, :].astype(jnp.float32)
               + jnp.dot(h, whh, preferred_element_type=jnp.float32))
        h_new = jnp.tanh(pre)
        valid = (lens > (t_base + i).astype(jnp.float32)).astype(jnp.float32)
        h = valid * h_new + (1.0 - valid) * h        # freeze h past sequence end
        out_ref[:, i, :] = (valid * h_new).astype(out_ref.dtype)  # 0 past end

    h_scr[...] = h

    @pl.when(ti == pl.num_programs(1) - 1)
    def _():
        hid_ref[...] = h.astype(hid_ref.dtype)       # final hidden only once


def _round_up(x, m):
    return ((x + m - 1) // m) * m


@functools.partial(jax.jit, static_argnames=("has_mask",))
def _masked_rnn_impl(inputs, mask, w_ih, w_hh, b_ih, b_hh, has_mask):
    B, T, D = inputs.shape
    H = w_hh.shape[0]
    out_dtype = inputs.dtype
    f32 = jnp.float32

    if has_mask:
        maskf = mask.astype(f32)
        lens = jnp.sum(maskf, axis=1)                         # (B,)
        x = inputs.astype(f32) * maskf[:, :, None]
    else:
        lens = jnp.full((B,), float(T), f32)
        x = inputs.astype(f32)

    # Hoisted input projection: one big (B*T, D) x (D, H) MXU matmul + bias.
    # XLA fuses the masking/cast above into this; the serial kernel below only
    # sees the projected activations.
    bias = (b_ih + b_hh).astype(f32)
    x_proj = jnp.einsum("btd,hd->bth", x, w_ih.astype(f32),
                        preferred_element_type=f32) + bias     # (B, T, H)

    whh_t = jnp.transpose(w_hh).astype(f32)                    # (H, H) = W_hh^T

    # Pad batch/time to sublane-friendly multiples of 8. Padded batch rows get
    # lens=0 (stay exactly 0); padded timesteps have t >= lens (output 0).
    Bb = 8           # batch rows per block
    Tb = 8           # timesteps per grid step (amortizes grid-step overhead)
    Bp = _round_up(B, Bb)
    Tp = _round_up(T, Tb)
    x_proj = jnp.pad(x_proj, ((0, Bp - B), (0, Tp - T), (0, 0)))
    lens_col = jnp.pad(lens, (0, Bp - B)).reshape(Bp, 1)
    nb, nt = Bp // Bb, Tp // Tb

    out_p, hid_p = pl.pallas_call(
        functools.partial(_rnn_scan_kernel, tb=Tb),
        out_shape=(jax.ShapeDtypeStruct((Bp, Tp, H), out_dtype),
                   jax.ShapeDtypeStruct((Bp, H), out_dtype)),
        grid_spec=pltpu.PrefetchScalarGridSpec(
            num_scalar_prefetch=0,
            grid=(nb, nt),
            in_specs=[
                # projected inputs, batch-first time-blocked slabs
                pl.BlockSpec((Bb, Tb, H), lambda bi, ti: (bi, ti, 0)),
                # W_hh^T: constant index -> DMA'd once and kept resident.
                # (For large H, switch to pipeline_mode=pl.Buffered(1) or a
                #  one-shot DMA into scratch to halve its VMEM footprint.)
                pl.BlockSpec((H, H), lambda bi, ti: (0, 0)),
                # per-row lengths (replaces the per-step (B,1) mask DMA)
                pl.BlockSpec((Bb, 1), lambda bi, ti: (bi, 0)),
            ],
            out_specs=[
                # batch-first output slabs -> no post-kernel transpose
                pl.BlockSpec((Bb, Tb, H), lambda bi, ti: (bi, ti, 0)),
                # resident final-hidden block (written on last time block only)
                pl.BlockSpec((Bb, H), lambda bi, ti: (bi, 0)),
            ],
            scratch_shapes=[pltpu.VMEM((Bb, H), jnp.float32)],
        ),
        compiler_params=pltpu.CompilerParams(
            # batch blocks are independent (megacore-parallel on v7x);
            # the time axis is a true sequential recurrence.
            dimension_semantics=("parallel", "arbitrary")),
    )(x_proj, whh_t, lens_col)

    out = out_p[:B, :T]                      # (B, T, H), already batch-first
    hidden = hid_p[:B][None, :, :]           # (1, B, H) like nn.RNN
    return out, hidden


def masked_rnn(inputs, mask, w_ih, w_hh, b_ih, b_hh):
    """MaskedRNN.forward equivalent. inputs: (B, T, D); mask: (B, T) or None."""
    has_mask = mask is not None
    if mask is None:
        B, T, _ = inputs.shape
        mask = jnp.ones((B, T), jnp.float32)  # ignored when has_mask=False
    return _masked_rnn_impl(inputs, mask, w_ih, w_hh, b_ih, b_hh, has_mask)


def _reference(inputs, mask, w_ih, w_hh, b_ih, b_hh):
    """Pure-JAX reference of the packed-RNN semantics (lax.scan)."""
    B, T, D = inputs.shape
    H = w_hh.shape[0]
    lens = jnp.sum(mask.astype(jnp.int32), axis=1)
    x = inputs.astype(jnp.float32) * mask.astype(jnp.float32)[:, :, None]

    def step(h, t):
        xt = x[:, t, :]
        h_new = jnp.tanh(xt @ w_ih.T + h @ w_hh.T + b_ih + b_hh)
        v = (t < lens).astype(jnp.float32)[:, None]
        h_keep = v * h_new + (1.0 - v) * h
        return h_keep, v * h_new

    h_last, outs = jax.lax.scan(step, jnp.zeros((B, H), jnp.float32),
                                jnp.arange(T))
    return jnp.transpose(outs, (1, 0, 2)).astype(inputs.dtype), \
        h_last[None].astype(inputs.dtype)


if __name__ == "__main__":
    B, T, D, H = 4, 32, 16, 32

    key = jax.random.PRNGKey(0)
    k_x, k_wih, k_whh, k_bih, k_bhh = jax.random.split(key, 5)

    # nn.RNN-style uniform(-1/sqrt(H), 1/sqrt(H)) init.
    bound = 1.0 / (H ** 0.5)
    w_ih = jax.random.uniform(k_wih, (H, D), jnp.float32, -bound, bound)
    w_hh = jax.random.uniform(k_whh, (H, H), jnp.float32, -bound, bound)
    b_ih = jax.random.uniform(k_bih, (H,), jnp.float32, -bound, bound)
    b_hh = jax.random.uniform(k_bhh, (H,), jnp.float32, -bound, bound)

    inputs = jax.random.normal(k_x, (B, T, D), jnp.float32)
    lens = jnp.array([32, 17, 5, 26], jnp.int32)                 # per-row lengths
    mask = (jnp.arange(T)[None, :] < lens[:, None]).astype(jnp.float32)  # (B, T)

    # masked path
    out, hidden = masked_rnn(inputs, mask, w_ih, w_hh, b_ih, b_hh)
    jax.block_until_ready((out, hidden))

    ref_out, ref_hidden = _reference(inputs, mask, w_ih, w_hh, b_ih, b_hh)
    assert out.shape == (B, T, H) and hidden.shape == (1, B, H)
    assert jnp.allclose(out, ref_out, atol=5e-3), "masked output mismatch"
    assert jnp.allclose(hidden, ref_hidden, atol=5e-3), "masked hidden mismatch"

    # mask=None path (plain full-length RNN)
    out_n, hid_n = masked_rnn(inputs, None, w_ih, w_hh, b_ih, b_hh)
    jax.block_until_ready((out_n, hid_n))
    ones = jnp.ones((B, T), jnp.float32)
    ref_out_n, ref_hid_n = _reference(inputs, ones, w_ih, w_hh, b_ih, b_hh)
    assert jnp.allclose(out_n, ref_out_n, atol=5e-3), "no-mask output mismatch"
    assert jnp.allclose(hid_n, ref_hid_n, atol=5e-3), "no-mask hidden mismatch"

    print("KERNEL_OK")
</pallas_src>

<mosaic_0001>
module attributes {stable_mosaic.version = 11 : i64} {
  func.func @_rnn_scan_kernel(%arg0: i32, %arg1: i32, %arg2: memref<8x8x32xf32, #tpu.memory_space<vmem>>, %arg3: memref<32x32xf32, #tpu.memory_space<vmem>>, %arg4: memref<8x1xf32, #tpu.memory_space<vmem>>, %arg5: memref<8x8x32xf32, #tpu.memory_space<vmem>>, %arg6: memref<8x32xf32, #tpu.memory_space<vmem>>, %arg7: memref<8x32xf32, #tpu.memory_space<vmem>>) attributes {dimension_semantics = [#tpu.dimension_semantics<parallel>, #tpu.dimension_semantics<arbitrary>], iteration_bounds = array<i64: 1, 4>, scalar_prefetch = 0 : i64, scratch_operands = 1 : i64, tpu.core_type = #tpu.core_type<tc>, window_params = [{transform_indices = @transform_0, window_bounds = array<i64: 8, 8, 32>}, {pipeline_mode = #tpu.pipeline_mode<synchronous>, transform_indices = @transform_1, window_bounds = array<i64: 32, 32>}, {transform_indices = @transform_2, window_bounds = array<i64: 8, 1>}, {transform_indices = @transform_3, window_bounds = array<i64: 8, 8, 32>}, {transform_indices = @transform_4, window_bounds = array<i64: 8, 32>}]} {
    %c0_i32 = arith.constant 0 : i32
    %0 = arith.cmpi eq, %arg1, %c0_i32 : i32
    %1 = arith.extui %0 : i1 to i32
    %c0_i32_0 = arith.constant 0 : i32
    %2 = arith.cmpi ne, %1, %c0_i32_0 : i32
    scf.if %2 {
      %cst_67 = arith.constant 0.000000e+00 : f32
      %195 = vector.broadcast %cst_67 : f32 to vector<8x32xf32>
      %c0_68 = arith.constant 0 : index
      %c0_69 = arith.constant 0 : index
      %196 = vector.load %arg7[%c0_68, %c0_69] : memref<8x32xf32, #tpu.memory_space<vmem>>, vector<8x32xf32>
      tpu.vector_store %arg7[%c0_68, %c0_69], %195 {strides = array<i32>} : memref<8x32xf32, #tpu.memory_space<vmem>>, vector<8x32xf32>,
    } else {
    }
    %c0 = arith.constant 0 : index
    %c0_1 = arith.constant 0 : index
    %3 = vector.load %arg7[%c0, %c0_1] : memref<8x32xf32, #tpu.memory_space<vmem>>, vector<8x32xf32>
    %c0_2 = arith.constant 0 : index
    %c0_3 = arith.constant 0 : index
    %4 = vector.load %arg3[%c0_2, %c0_3] : memref<32x32xf32, #tpu.memory_space<vmem>>, vector<32x32xf32>
    %c0_4 = arith.constant 0 : index
    %c0_5 = arith.constant 0 : index
    %5 = vector.load %arg4[%c0_4, %c0_5] : memref<8x1xf32, #tpu.memory_space<vmem>>, vector<8x1xf32>
    %c8_i32 = arith.constant 8 : i32
    %6 = arith.muli %arg1, %c8_i32 : i32
    %c0_6 = arith.constant 0 : index
    %c0_7 = arith.constant 0 : index
    %c0_8 = arith.constant 0 : index
    %7 = vector.load %arg2[%c0_6, %c0_7, %c0_8] : memref<8x8x32xf32, #tpu.memory_space<vmem>>, vector<8x1x32xf32>
    %8 = vector.shape_cast %7 : vector<8x1x32xf32> to vector<8x32xf32>
    %cst = arith.constant dense<0.000000e+00> : vector<8x32xf32>
    %9 = tpu.matmul %3, %4, %cst {dimension_numbers = #tpu.dot_dimension_numbers<[1], [0], [0], [1], [0, 0, 1, 1], [], []>} : vector<8x32xf32>, vector<32x32xf32>, vector<8x32xf32> -> vector<8x32xf32>
    %10 = arith.addf %8, %9 : vector<8x32xf32>
    %11 = math.tanh %10 : vector<8x32xf32>
    %c0_i32_9 = arith.constant 0 : i32
    %12 = arith.addi %6, %c0_i32_9 : i32
    %13 = arith.sitofp %12 : i32 to f32
    %14 = vector.broadcast %13 : f32 to vector<8x1xf32>
    %15 = arith.cmpf ogt, %5, %14 : vector<8x1xf32>
    %16 = arith.extui %15 : vector<8x1xi1> to vector<8x1xi32>
    %17 = arith.sitofp %16 : vector<8x1xi32> to vector<8x1xf32>
    %18 = vector.broadcast %17 : vector<8x1xf32> to vector<8x32xf32>
    %19 = arith.mulf %18, %11 : vector<8x32xf32>
    %cst_10 = arith.constant 1.000000e+00 : f32
    %20 = vector.broadcast %cst_10 : f32 to vector<8x1xf32>
    %21 = arith.subf %20, %17 : vector<8x1xf32>
    %22 = vector.broadcast %21 : vector<8x1xf32> to vector<8x32xf32>
    %23 = arith.mulf %22, %3 : vector<8x32xf32>
    %24 = arith.addf %19, %23 : vector<8x32xf32>
    %25 = vector.broadcast %17 : vector<8x1xf32> to vector<8x32xf32>
    %26 = arith.mulf %25, %11 : vector<8x32xf32>
    %c0_11 = arith.constant 0 : index
    %c0_12 = arith.constant 0 : index
    %c0_13 = arith.constant 0 : index
    %27 = vector.load %arg5[%c0_11, %c0_12, %c0_13] : memref<8x8x32xf32, #tpu.memory_space<vmem>>, vector<8x1x32xf32>
    %28 = vector.shape_cast %27 : vector<8x1x32xf32> to vector<8x32xf32>
    %29 = vector.shape_cast %26 : vector<8x32xf32> to vector<8x1x32xf32>
    tpu.vector_store %arg5[%c0_11, %c0_12, %c0_13], %29 {strides = array<i32>} : memref<8x8x32xf32, #tpu.memory_space<vmem>>, vector<8x1x32xf32>,
    %c0_14 = arith.constant 0 : index
    %c1 = arith.constant 1 : index
    %c0_15 = arith.constant 0 : index
    %30 = vector.load %arg2[%c0_14, %c1, %c0_15] : memref<8x8x32xf32, #tpu.memory_space<vmem>>, vector<8x1x32xf32>
    %31 = vector.shape_cast %30 : vector<8x1x32xf32> to vector<8x32xf32>
    %cst_16 = arith.constant dense<0.000000e+00> : vector<8x32xf32>
    %32 = tpu.matmul %24, %4, %cst_16 {dimension_numbers = #tpu.dot_dimension_numbers<[1], [0], [0], [1], [0, 0, 1, 1], [], []>} : vector<8x32xf32>, vector<32x32xf32>, vector<8x32xf32> -> vector<8x32xf32>
    %33 = arith.addf %31, %32 : vector<8x32xf32>
    %34 = math.tanh %33 : vector<8x32xf32>
    %c1_i32 = arith.constant 1 : i32
    %35 = arith.addi %6, %c1_i32 : i32
    %36 = arith.sitofp %35 : i32 to f32
    %37 = vector.broadcast %36 : f32 to vector<8x1xf32>
    %38 = arith.cmpf ogt, %5, %37 : vector<8x1xf32>
    %39 = arith.extui %38 : vector<8x1xi1> to vector<8x1xi32>
    %40 = arith.sitofp %39 : vector<8x1xi32> to vector<8x1xf32>
    %41 = vector.broadcast %40 : vector<8x1xf32> to vector<8x32xf32>
    %42 = arith.mulf %41, %34 : vector<8x32xf32>
    %cst_17 = arith.constant 1.000000e+00 : f32
    %43 = vector.broadcast %cst_17 : f32 to vector<8x1xf32>
    %44 = arith.subf %43, %40 : vector<8x1xf32>
    %45 = vector.broadcast %44 : vector<8x1xf32> to vector<8x32xf32>
    %46 = arith.mulf %45, %24 : vector<8x32xf32>
    %47 = arith.addf %42, %46 : vector<8x32xf32>
    %48 = vector.broadcast %40 : vector<8x1xf32> to vector<8x32xf32>
    %49 = arith.mulf %48, %34 : vector<8x32xf32>
    %c0_18 = arith.constant 0 : index
    %c1_19 = arith.constant 1 : index
    %c0_20 = arith.constant 0 : index
    %50 = vector.load %arg5[%c0_18, %c1_19, %c0_20] : memref<8x8x32xf32, #tpu.memory_space<vmem>>, vector<8x1x32xf32>
    %51 = vector.shape_cast %50 : vector<8x1x32xf32> to vector<8x32xf32>
    %52 = vector.shape_cast %49 : vector<8x32xf32> to vector<8x1x32xf32>
    tpu.vector_store %arg5[%c0_18, %c1_19, %c0_20], %52 {strides = array<i32>} : memref<8x8x32xf32, #tpu.memory_space<vmem>>, vector<8x1x32xf32>,
    %c0_21 = arith.constant 0 : index
    %c2 = arith.constant 2 : index
    %c0_22 = arith.constant 0 : index
    %53 = vector.load %arg2[%c0_21, %c2, %c0_22] : memref<8x8x32xf32, #tpu.memory_space<vmem>>, vector<8x1x32xf32>
    %54 = vector.shape_cast %53 : vector<8x1x32xf32> to vector<8x32xf32>
    %cst_23 = arith.constant dense<0.000000e+00> : vector<8x32xf32>
    %55 = tpu.matmul %47, %4, %cst_23 {dimension_numbers = #tpu.dot_dimension_numbers<[1], [0], [0], [1], [0, 0, 1, 1], [], []>} : vector<8x32xf32>, vector<32x32xf32>, vector<8x32xf32> -> vector<8x32xf32>
    %56 = arith.addf %54, %55 : vector<8x32xf32>
    %57 = math.tanh %56 : vector<8x32xf32>
    %c2_i32 = arith.constant 2 : i32
    %58 = arith.addi %6, %c2_i32 : i32
    %59 = arith.sitofp %58 : i32 to f32
    %60 = vector.broadcast %59 : f32 to vector<8x1xf32>
    %61 = arith.cmpf ogt, %5, %60 : vector<8x1xf32>
    %62 = arith.extui %61 : vector<8x1xi1> to vector<8x1xi32>
    %63 = arith.sitofp %62 : vector<8x1xi32> to vector<8x1xf32>
    %64 = vector.broadcast %63 : vector<8x1xf32> to vector<8x32xf32>
    %65 = arith.mulf %64, %57 : vector<8x32xf32>
    %cst_24 = arith.constant 1.000000e+00 : f32
    %66 = vector.broadcast %cst_24 : f32 to vector<8x1xf32>
    %67 = arith.subf %66, %63 : vector<8x1xf32>
    %68 = vector.broadcast %67 : vector<8x1xf32> to vector<8x32xf32>
    %69 = arith.mulf %68, %47 : vector<8x32xf32>
    %70 = arith.addf %65, %69 : vector<8x32xf32>
    %71 = vector.broadcast %63 : vector<8x1xf32> to vector<8x32xf32>
    %72 = arith.mulf %71, %57 : vector<8x32xf32>
    %c0_25 = arith.constant 0 : index
    %c2_26 = arith.constant 2 : index
    %c0_27 = arith.constant 0 : index
    %73 = vector.load %arg5[%c0_25, %c2_26, %c0_27] : memref<8x8x32xf32, #tpu.memory_space<vmem>>, vector<8x1x32xf32>
    %74 = vector.shape_cast %73 : vector<8x1x32xf32> to vector<8x32xf32>
    %75 = vector.shape_cast %72 : vector<8x32xf32> to vector<8x1x32xf32>
    tpu.vector_store %arg5[%c0_25, %c2_26, %c0_27], %75 {strides = array<i32>} : memref<8x8x32xf32, #tpu.memory_space<vmem>>, vector<8x1x32xf32>,
    %c0_28 = arith.constant 0 : index
    %c3 = arith.constant 3 : index
    %c0_29 = arith.constant 0 : index
    %76 = vector.load %arg2[%c0_28, %c3, %c0_29] : memref<8x8x32xf32, #tpu.memory_space<vmem>>, vector<8x1x32xf32>
    %77 = vector.shape_cast %76 : vector<8x1x32xf32> to vector<8x32xf32>
    %cst_30 = arith.constant dense<0.000000e+00> : vector<8x32xf32>
    %78 = tpu.matmul %70, %4, %cst_30 {dimension_numbers = #tpu.dot_dimension_numbers<[1], [0], [0], [1], [0, 0, 1, 1], [], []>} : vector<8x32xf32>, vector<32x32xf32>, vector<8x32xf32> -> vector<8x32xf32>
    %79 = arith.addf %77, %78 : vector<8x32xf32>
    %80 = math.tanh %79 : vector<8x32xf32>
    %c3_i32 = arith.constant 3 : i32
    %81 = arith.addi %6, %c3_i32 : i32
    %82 = arith.sitofp %81 : i32 to f32
    %83 = vector.broadcast %82 : f32 to vector<8x1xf32>
    %84 = arith.cmpf ogt, %5, %83 : vector<8x1xf32>
    %85 = arith.extui %84 : vector<8x1xi1> to vector<8x1xi32>
    %86 = arith.sitofp %85 : vector<8x1xi32> to vector<8x1xf32>
    %87 = vector.broadcast %86 : vector<8x1xf32> to vector<8x32xf32>
    %88 = arith.mulf %87, %80 : vector<8x32xf32>
    %cst_31 = arith.constant 1.000000e+00 : f32
    %89 = vector.broadcast %cst_31 : f32 to vector<8x1xf32>
    %90 = arith.subf %89, %86 : vector<8x1xf32>
    %91 = vector.broadcast %90 : vector<8x1xf32> to vector<8x32xf32>
    %92 = arith.mulf %91, %70 : vector<8x32xf32>
    %93 = arith.addf %88, %92 : vector<8x32xf32>
    %94 = vector.broadcast %86 : vector<8x1xf32> to vector<8x32xf32>
    %95 = arith.mulf %94, %80 : vector<8x32xf32>
    %c0_32 = arith.constant 0 : index
    %c3_33 = arith.constant 3 : index
    %c0_34 = arith.constant 0 : index
    %96 = vector.load %arg5[%c0_32, %c3_33, %c0_34] : memref<8x8x32xf32, #tpu.memory_space<vmem>>, vector<8x1x32xf32>
    %97 = vector.shape_cast %96 : vector<8x1x32xf32> to vector<8x32xf32>
    %98 = vector.shape_cast %95 : vector<8x32xf32> to vector<8x1x32xf32>
    tpu.vector_store %arg5[%c0_32, %c3_33, %c0_34], %98 {strides = array<i32>} : memref<8x8x32xf32, #tpu.memory_space<vmem>>, vector<8x1x32xf32>,
    %c0_35 = arith.constant 0 : index
    %c4 = arith.constant 4 : index
    %c0_36 = arith.constant 0 : index
    %99 = vector.load %arg2[%c0_35, %c4, %c0_36] : memref<8x8x32xf32, #tpu.memory_space<vmem>>, vector<8x1x32xf32>
    %100 = vector.shape_cast %99 : vector<8x1x32xf32> to vector<8x32xf32>
    %cst_37 = arith.constant dense<0.000000e+00> : vector<8x32xf32>
    %101 = tpu.matmul %93, %4, %cst_37 {dimension_numbers = #tpu.dot_dimension_numbers<[1], [0], [0], [1], [0, 0, 1, 1], [], []>} : vector<8x32xf32>, vector<32x32xf32>, vector<8x32xf32> -> vector<8x32xf32>
    %102 = arith.addf %100, %101 : vector<8x32xf32>
    %103 = math.tanh %102 : vector<8x32xf32>
    %c4_i32 = arith.constant 4 : i32
    %104 = arith.addi %6, %c4_i32 : i32
    %105 = arith.sitofp %104 : i32 to f32
    %106 = vector.broadcast %105 : f32 to vector<8x1xf32>
    %107 = arith.cmpf ogt, %5, %106 : vector<8x1xf32>
    %108 = arith.extui %107 : vector<8x1xi1> to vector<8x1xi32>
    %109 = arith.sitofp %108 : vector<8x1xi32> to vector<8x1xf32>
    %110 = vector.broadcast %109 : vector<8x1xf32> to vector<8x32xf32>
    %111 = arith.mulf %110, %103 : vector<8x32xf32>
    %cst_38 = arith.constant 1.000000e+00 : f32
    %112 = vector.broadcast %cst_38 : f32 to vector<8x1xf32>
    %113 = arith.subf %112, %109 : vector<8x1xf32>
    %114 = vector.broadcast %113 : vector<8x1xf32> to vector<8x32xf32>
    %115 = arith.mulf %114, %93 : vector<8x32xf32>
    %116 = arith.addf %111, %115 : vector<8x32xf32>
    %117 = vector.broadcast %109 : vector<8x1xf32> to vector<8x32xf32>
    %118 = arith.mulf %117, %103 : vector<8x32xf32>
    %c0_39 = arith.constant 0 : index
    %c4_40 = arith.constant 4 : index
    %c0_41 = arith.constant 0 : index
    %119 = vector.load %arg5[%c0_39, %c4_40, %c0_41] : memref<8x8x32xf32, #tpu.memory_space<vmem>>, vector<8x1x32xf32>
    %120 = vector.shape_cast %119 : vector<8x1x32xf32> to vector<8x32xf32>
    %121 = vector.shape_cast %118 : vector<8x32xf32> to vector<8x1x32xf32>
    tpu.vector_store %arg5[%c0_39, %c4_40, %c0_41], %121 {strides = array<i32>} : memref<8x8x32xf32, #tpu.memory_space<vmem>>, vector<8x1x32xf32>,
    %c0_42 = arith.constant 0 : index
    %c5 = arith.constant 5 : index
    %c0_43 = arith.constant 0 : index
    %122 = vector.load %arg2[%c0_42, %c5, %c0_43] : memref<8x8x32xf32, #tpu.memory_space<vmem>>, vector<8x1x32xf32>
    %123 = vector.shape_cast %122 : vector<8x1x32xf32> to vector<8x32xf32>
    %cst_44 = arith.constant dense<0.000000e+00> : vector<8x32xf32>
    %124 = tpu.matmul %116, %4, %cst_44 {dimension_numbers = #tpu.dot_dimension_numbers<[1], [0], [0], [1], [0, 0, 1, 1], [], []>} : vector<8x32xf32>, vector<32x32xf32>, vector<8x32xf32> -> vector<8x32xf32>
    %125 = arith.addf %123, %124 : vector<8x32xf32>
    %126 = math.tanh %125 : vector<8x32xf32>
    %c5_i32 = arith.constant 5 : i32
    %127 = arith.addi %6, %c5_i32 : i32
    %128 = arith.sitofp %127 : i32 to f32
    %129 = vector.broadcast %128 : f32 to vector<8x1xf32>
    %130 = arith.cmpf ogt, %5, %129 : vector<8x1xf32>
    %131 = arith.extui %130 : vector<8x1xi1> to vector<8x1xi32>
    %132 = arith.sitofp %131 : vector<8x1xi32> to vector<8x1xf32>
    %133 = vector.broadcast %132 : vector<8x1xf32> to vector<8x32xf32>
    %134 = arith.mulf %133, %126 : vector<8x32xf32>
    %cst_45 = arith.constant 1.000000e+00 : f32
    %135 = vector.broadcast %cst_45 : f32 to vector<8x1xf32>
    %136 = arith.subf %135, %132 : vector<8x1xf32>
    %137 = vector.broadcast %136 : vector<8x1xf32> to vector<8x32xf32>
    %138 = arith.mulf %137, %116 : vector<8x32xf32>
    %139 = arith.addf %134, %138 : vector<8x32xf32>
    %140 = vector.broadcast %132 : vector<8x1xf32> to vector<8x32xf32>
    %141 = arith.mulf %140, %126 : vector<8x32xf32>
    %c0_46 = arith.constant 0 : index
    %c5_47 = arith.constant 5 : index
    %c0_48 = arith.constant 0 : index
    %142 = vector.load %arg5[%c0_46, %c5_47, %c0_48] : memref<8x8x32xf32, #tpu.memory_space<vmem>>, vector<8x1x32xf32>
    %143 = vector.shape_cast %142 : vector<8x1x32xf32> to vector<8x32xf32>
    %144 = vector.shape_cast %141 : vector<8x32xf32> to vector<8x1x32xf32>
    tpu.vector_store %arg5[%c0_46, %c5_47, %c0_48], %144 {strides = array<i32>} : memref<8x8x32xf32, #tpu.memory_space<vmem>>, vector<8x1x32xf32>,
    %c0_49 = arith.constant 0 : index
    %c6 = arith.constant 6 : index
    %c0_50 = arith.constant 0 : index
    %145 = vector.load %arg2[%c0_49, %c6, %c0_50] : memref<8x8x32xf32, #tpu.memory_space<vmem>>, vector<8x1x32xf32>
    %146 = vector.shape_cast %145 : vector<8x1x32xf32> to vector<8x32xf32>
    %cst_51 = arith.constant dense<0.000000e+00> : vector<8x32xf32>
    %147 = tpu.matmul %139, %4, %cst_51 {dimension_numbers = #tpu.dot_dimension_numbers<[1], [0], [0], [1], [0, 0, 1, 1], [], []>} : vector<8x32xf32>, vector<32x32xf32>, vector<8x32xf32> -> vector<8x32xf32>
    %148 = arith.addf %146, %147 : vector<8x32xf32>
    %149 = math.tanh %148 : vector<8x32xf32>
    %c6_i32 = arith.constant 6 : i32
    %150 = arith.addi %6, %c6_i32 : i32
    %151 = arith.sitofp %150 : i32 to f32
    %152 = vector.broadcast %151 : f32 to vector<8x1xf32>
    %153 = arith.cmpf ogt, %5, %152 : vector<8x1xf32>
    %154 = arith.extui %153 : vector<8x1xi1> to vector<8x1xi32>
    %155 = arith.sitofp %154 : vector<8x1xi32> to vector<8x1xf32>
    %156 = vector.broadcast %155 : vector<8x1xf32> to vector<8x32xf32>
    %157 = arith.mulf %156, %149 : vector<8x32xf32>
    %cst_52 = arith.constant 1.000000e+00 : f32
    %158 = vector.broadcast %cst_52 : f32 to vector<8x1xf32>
    %159 = arith.subf %158, %155 : vector<8x1xf32>
    %160 = vector.broadcast %159 : vector<8x1xf32> to vector<8x32xf32>
    %161 = arith.mulf %160, %139 : vector<8x32xf32>
    %162 = arith.addf %157, %161 : vector<8x32xf32>
    %163 = vector.broadcast %155 : vector<8x1xf32> to vector<8x32xf32>
    %164 = arith.mulf %163, %149 : vector<8x32xf32>
    %c0_53 = arith.constant 0 : index
    %c6_54 = arith.constant 6 : index
    %c0_55 = arith.constant 0 : index
    %165 = vector.load %arg5[%c0_53, %c6_54, %c0_55] : memref<8x8x32xf32, #tpu.memory_space<vmem>>, vector<8x1x32xf32>
    %166 = vector.shape_cast %165 : vector<8x1x32xf32> to vector<8x32xf32>
    %167 = vector.shape_cast %164 : vector<8x32xf32> to vector<8x1x32xf32>
    tpu.vector_store %arg5[%c0_53, %c6_54, %c0_55], %167 {strides = array<i32>} : memref<8x8x32xf32, #tpu.memory_space<vmem>>, vector<8x1x32xf32>,
    %c0_56 = arith.constant 0 : index
    %c7 = arith.constant 7 : index
    %c0_57 = arith.constant 0 : index
    %168 = vector.load %arg2[%c0_56, %c7, %c0_57] : memref<8x8x32xf32, #tpu.memory_space<vmem>>, vector<8x1x32xf32>
    %169 = vector.shape_cast %168 : vector<8x1x32xf32> to vector<8x32xf32>
    %cst_58 = arith.constant dense<0.000000e+00> : vector<8x32xf32>
    %170 = tpu.matmul %162, %4, %cst_58 {dimension_numbers = #tpu.dot_dimension_numbers<[1], [0], [0], [1], [0, 0, 1, 1], [], []>} : vector<8x32xf32>, vector<32x32xf32>, vector<8x32xf32> -> vector<8x32xf32>
    %171 = arith.addf %169, %170 : vector<8x32xf32>
    %172 = math.tanh %171 : vector<8x32xf32>
    %c7_i32 = arith.constant 7 : i32
    %173 = arith.addi %6, %c7_i32 : i32
    %174 = arith.sitofp %173 : i32 to f32
    %175 = vector.broadcast %174 : f32 to vector<8x1xf32>
    %176 = arith.cmpf ogt, %5, %175 : vector<8x1xf32>
    %177 = arith.extui %176 : vector<8x1xi1> to vector<8x1xi32>
    %178 = arith.sitofp %177 : vector<8x1xi32> to vector<8x1xf32>
    %179 = vector.broadcast %178 : vector<8x1xf32> to vector<8x32xf32>
    %180 = arith.mulf %179, %172 : vector<8x32xf32>
    %cst_59 = arith.constant 1.000000e+00 : f32
    %181 = vector.broadcast %cst_59 : f32 to vector<8x1xf32>
    %182 = arith.subf %181, %178 : vector<8x1xf32>
    %183 = vector.broadcast %182 : vector<8x1xf32> to vector<8x32xf32>
    %184 = arith.mulf %183, %162 : vector<8x32xf32>
    %185 = arith.addf %180, %184 : vector<8x32xf32>
    %186 = vector.broadcast %178 : vector<8x1xf32> to vector<8x32xf32>
    %187 = arith.mulf %186, %172 : vector<8x32xf32>
    %c0_60 = arith.constant 0 : index
    %c7_61 = arith.constant 7 : index
    %c0_62 = arith.constant 0 : index
    %188 = vector.load %arg5[%c0_60, %c7_61, %c0_62] : memref<8x8x32xf32, #tpu.memory_space<vmem>>, vector<8x1x32xf32>
    %189 = vector.shape_cast %188 : vector<8x1x32xf32> to vector<8x32xf32>
    %190 = vector.shape_cast %187 : vector<8x32xf32> to vector<8x1x32xf32>
    tpu.vector_store %arg5[%c0_60, %c7_61, %c0_62], %190 {strides = array<i32>} : memref<8x8x32xf32, #tpu.memory_space<vmem>>, vector<8x1x32xf32>,
    %c0_63 = arith.constant 0 : index
    %c0_64 = arith.constant 0 : index
    %191 = vector.load %arg7[%c0_63, %c0_64] : memref<8x32xf32, #tpu.memory_space<vmem>>, vector<8x32xf32>
    tpu.vector_store %arg7[%c0_63, %c0_64], %185 {strides = array<i32>} : memref<8x32xf32, #tpu.memory_space<vmem>>, vector<8x32xf32>,
    %c3_i32_65 = arith.constant 3 : i32
    %192 = arith.cmpi eq, %arg1, %c3_i32_65 : i32
    %193 = arith.extui %192 : i1 to i32
    %c0_i32_66 = arith.constant 0 : i32
    %194 = arith.cmpi ne, %193, %c0_i32_66 : i32
    scf.if %194 {
      %c0_67 = arith.constant 0 : index
      %c0_68 = arith.constant 0 : index
      %195 = vector.load %arg6[%c0_67, %c0_68] : memref<8x32xf32, #tpu.memory_space<vmem>>, vector<8x32xf32>
      tpu.vector_store %arg6[%c0_67, %c0_68], %185 {strides = array<i32>} : memref<8x32xf32, #tpu.memory_space<vmem>>, vector<8x32xf32>,
    } else {
    }
    return
  }
  func.func @transform_0(%arg0: i32, %arg1: i32) -> (i32, i32, i32) {
    %c0_i32 = arith.constant 0 : i32
    %c0_i32_0 = arith.constant 0 : i32
    return %arg0, %arg1, %c0_i32 : i32, i32, i32
  }
  func.func @transform_1(%arg0: i32, %arg1: i32) -> (i32, i32) {
    %c0_i32 = arith.constant 0 : i32
    %c0_i32_0 = arith.constant 0 : i32
    %c0_i32_1 = arith.constant 0 : i32
    return %c0_i32, %c0_i32_0 : i32, i32
  }
  func.func @transform_2(%arg0: i32, %arg1: i32) -> (i32, i32) {
    %c0_i32 = arith.constant 0 : i32
    %c0_i32_0 = arith.constant 0 : i32
    return %arg0, %c0_i32 : i32, i32
  }
  func.func @transform_3(%arg0: i32, %arg1: i32) -> (i32, i32, i32) {
    %c0_i32 = arith.constant 0 : i32
    %c0_i32_0 = arith.constant 0 : i32
    return %arg0, %arg1, %c0_i32 : i32, i32, i32
  }
  func.func @transform_4(%arg0: i32, %arg1: i32) -> (i32, i32) {
    %c0_i32 = arith.constant 0 : i32
    %c0_i32_0 = arith.constant 0 : i32
    return %arg0, %c0_i32 : i32, i32
  }
}

</mosaic_0001>

<llo_original>
// kernel: _masked_rnn_impl.1
$region0: #{_masked_rnn_impl.1}
  #allocation0 [shape = 'u32[]', space=smem, size = 0x4, offset = 0x4, fixed_abs, tag = 'smem constant byte address 0x4 - core index']
  #allocation1 [shape = 'u32[144,128]{1,0:T(1,128)}', space=vmem, size = 0x12000, scoped, tag = 'internal scratch']
  #allocation2 [shape = 'f32[8,32]{1,0:T(8,128)}', space=vmem, size = 0x1000, scoped, tag = 'scratch operand']
  %s0 = inlined_call_operand.vmem [shape: f32[8,32,32], index: 0, kind: input, shape index: {}]
  %s1 = inlined_call_operand.vmem [shape: f32[32,32], index: 1, kind: input, shape index: {}]
  %s2 = inlined_call_operand.vmem [shape: f32[8,1], index: 2, kind: input, shape index: {}]
  %s3 = inlined_call_operand.vmem [shape: f32[8,32,32], index: 3, kind: output, shape index: {0}]
  %s4 = inlined_call_operand.vmem [shape: f32[8,32], index: 4, kind: output, shape index: {1}]
  %5 = xla_tuple %s3, %s4
  %s6 = sld [smem:[#allocation0]]
  $region133: #{_masked_rnn_impl.1} parent=0
    _
  %s8 = ssub.s32 1, %s6
  %s9 = scalar_select 0, %s8, %s6
  $region1: #{_masked_rnn_impl.1} parent=0
    #allocation3 [shape = 'u8[65536]{0}', space=vmem, size = 0x10000, scoped, tag = 'input window, operand 0']
    #allocation4 [shape = 'u8[65536]{0}', space=vmem, size = 0x10000, scoped, tag = 'output window, operand 0']
    loop: start=0, step=1, limit=6
    $region2: #{_masked_rnn_impl.1} parent=1 // loop_pre_header
      _
    $region3: #{_masked_rnn_impl.1} parent=1 // loop_header
      %s11 = sphi 0, %s15
      %p12 = scmp.ge.s32.totalorder %s11, 6
      %s18 = sphi 0, %s30
      %s19 = sphi 0, %s26
      %s20 = sphi 0, %s18
      %s21 = sphi 0, %s19
      %s22 = sphi 0, %s20
      %s23 = sphi 0, %s21
      %s35 = sphi 0, %s37
      %s38 = sphi 0, %s35
      %s39 = sphi 0, %s38
      %s55 = sphi 0, %s39
      %s59 = sphi 0, %s59
      %s61 = sphi 0, %s59
      %s62 = sphi 0, %s61
      %s76 = sphi 0, %s62
      %s82 = sphi 0, %s84
      %s85 = sphi 0, %s82
      %s86 = sphi 0, %s85
      %s102 = sphi 0, %s86
      %s110 = sphi 0, %s112
      %s113 = sphi 0, %s110
      %s114 = sphi 0, %s113
      %s130 = sphi 0, %s114
      %s136 = sphi 0, %s138
      %s139 = sphi 0, %s136
      %s140 = sphi 0, %s139
      %s156 = sphi 0, %s140
    $region4: #{_masked_rnn_impl.1} parent=1 // loop_header_branch
      %14 = sbr.rel (%p12) target = $region8
    $region5: #{_masked_rnn_impl.1} parent=1 // loop_body
      %s16 = ssub.s32 %s11, 1
      %s17 = ssub.s32 %s11, 2
      %s24 = sadd.s32 1, %s19
      %p25 = scmp.ge.s32.totalorder %s24, 4
      %s26 = scalar_select %p25, 0, %s24
      %s27 = sadd.s32 1, %s18
      %s28 = scalar_select %p25, %s27, %s18
      %p29 = scmp.ge.s32.totalorder %s28, 1
      %s30 = scalar_select %p29, 0, %s28
      %s31 = ssub.s32 %s18, %s30
      %s32 = ssub.s32 %s19, %s26
      %s33 = sor.u32 %s31, %s32
      %p34 = scmp.eq.s32.totalorder %s33, 0
      %s36 = sadd.s32 %s35, 1
      %s37 = scalar_select %p34, %s35, %s36
      %p40 = pneg %p34
      %p41 = scmp.eq.s32.totalorder %s11, 3
      %p42 = por %p40, %p41
      %p43 = scmp.ne.s32.totalorder %s35, %s38
      %p44 = scmp.eq.s32.totalorder %s11, 0
      %p45 = por %p43, %p44
      %p46 = scmp.ne.s32.totalorder %s35, %s38
      %p47 = scmp.eq.s32.totalorder %s16, 3
      %p48 = por %p46, %p47
      %p49 = scmp.ne.s32.totalorder %s38, %s39
      %p50 = scmp.eq.s32.totalorder %s16, 0
      %p51 = por %p49, %p50
      %p52 = scmp.ne.s32.totalorder %s38, %s39
      %p53 = scmp.eq.s32.totalorder %s17, 3
      %p54 = por %p52, %p53
      %p56 = scmp.ne.s32.totalorder %s39, %s55
      %p57 = scmp.eq.s32.totalorder %s17, 0
      %p58 = por %p56, %p57
      %s60 = sadd.s32 %s59, 1
      %p63 = scmp.eq.s32.totalorder %s11, 3
      %p64 = scmp.ne.s32.totalorder %s59, %s61
      %p65 = scmp.eq.s32.totalorder %s11, 0
      %p66 = por %p64, %p65
      %p67 = scmp.ne.s32.totalorder %s59, %s61
      %p68 = scmp.eq.s32.totalorder %s16, 3
      %p69 = por %p67, %p68
      %p70 = scmp.ne.s32.totalorder %s61, %s62
      %p71 = scmp.eq.s32.totalorder %s16, 0
      %p72 = por %p70, %p71
      %p73 = scmp.ne.s32.totalorder %s61, %s62
      %p74 = scmp.eq.s32.totalorder %s17, 3
      %p75 = por %p73, %p74
      %p77 = scmp.ne.s32.totalorder %s62, %s76
      %p78 = scmp.eq.s32.totalorder %s17, 0
      %p79 = por %p77, %p78
      %s80 = ssub.s32 %s18, %s30
      %p81 = scmp.eq.s32.totalorder %s80, 0
      %s83 = sadd.s32 %s82, 1
      %s84 = scalar_select %p81, %s82, %s83
      %p87 = pneg %p81
      %p88 = scmp.eq.s32.totalorder %s11, 3
      %p89 = por %p87, %p88
      %p90 = scmp.ne.s32.totalorder %s82, %s85
      %p91 = scmp.eq.s32.totalorder %s11, 0
      %p92 = por %p90, %p91
      %p93 = scmp.ne.s32.totalorder %s82, %s85
      %p94 = scmp.eq.s32.totalorder %s16, 3
      %p95 = por %p93, %p94
      %p96 = scmp.ne.s32.totalorder %s85, %s86
      %p97 = scmp.eq.s32.totalorder %s16, 0
      %p98 = por %p96, %p97
      %p99 = scmp.ne.s32.totalorder %s85, %s86
      %p100 = scmp.eq.s32.totalorder %s17, 3
      %p101 = por %p99, %p100
      %p103 = scmp.ne.s32.totalorder %s86, %s102
      %p104 = scmp.eq.s32.totalorder %s17, 0
      %p105 = por %p103, %p104
      %s106 = ssub.s32 %s18, %s30
      %s107 = ssub.s32 %s19, %s26
      %s108 = sor.u32 %s106, %s107
      %p109 = scmp.eq.s32.totalorder %s108, 0
      %s111 = sadd.s32 %s110, 1
      %s112 = scalar_select %p109, %s110, %s111
      %p115 = pneg %p109
      %p116 = scmp.eq.s32.totalorder %s11, 3
      %p117 = por %p115, %p116
      %p118 = scmp.ne.s32.totalorder %s110, %s113
      %p119 = scmp.eq.s32.totalorder %s11, 0
      %p120 = por %p118, %p119
      %p121 = scmp.ne.s32.totalorder %s110, %s113
      %p122 = scmp.eq.s32.totalorder %s16, 3
      %p123 = por %p121, %p122
      %p124 = scmp.ne.s32.totalorder %s113, %s114
      %p125 = scmp.eq.s32.totalorder %s16, 0
      %p126 = por %p124, %p125
      %p127 = scmp.ne.s32.totalorder %s113, %s114
      %p128 = scmp.eq.s32.totalorder %s17, 3
      %p129 = por %p127, %p128
      %p131 = scmp.ne.s32.totalorder %s114, %s130
      %p132 = scmp.eq.s32.totalorder %s17, 0
      %p133 = por %p131, %p132
      %s134 = ssub.s32 %s18, %s30
      %p135 = scmp.eq.s32.totalorder %s134, 0
      %s137 = sadd.s32 %s136, 1
      %s138 = scalar_select %p135, %s136, %s137
      %p141 = pneg %p135
      %p142 = scmp.eq.s32.totalorder %s11, 3
      %p143 = por %p141, %p142
      %p144 = scmp.ne.s32.totalorder %s136, %s139
      %p145 = scmp.eq.s32.totalorder %s11, 0
      %p146 = por %p144, %p145
      %p147 = scmp.ne.s32.totalorder %s136, %s139
      %p148 = scmp.eq.s32.totalorder %s16, 3
      %p149 = por %p147, %p148
      %p150 = scmp.ne.s32.totalorder %s139, %s140
      %p151 = scmp.eq.s32.totalorder %s16, 0
      %p152 = por %p150, %p151
      %p153 = scmp.ne.s32.totalorder %s139, %s140
      %p154 = scmp.eq.s32.totalorder %s17, 3
      %p155 = por %p153, %p154
      %p157 = scmp.ne.s32.totalorder %s140, %s156
      %p158 = scmp.eq.s32.totalorder %s17, 0
      %p159 = por %p157, %p158
      %p160 = scmp.le.s32.totalorder 1, %s11
      %p161 = scmp.lt.s32.totalorder %s11, 5
      %p162 = pnand %p160, %p161
      %p163 = pneg %p162
      // Predicated region
      $region9: #{_masked_rnn_impl.1} parent=5 // pred_check
        _
      $region10: #{_masked_rnn_impl.1} parent=5 // pred_check_branch
        %165 = sbr.rel (%p162) target = $region12
      $region11: #{_masked_rnn_impl.1} parent=5 // pred_region
        %s166 = ssub.s32 %s11, 1
        // Predicated region
        $region13: #{_masked_rnn_impl.1} parent=11 // pred_check
          %p167 = pneg %p72
        $region14: #{_masked_rnn_impl.1} parent=11 // pred_check_branch
          %169 = sbr.rel (%p167) target = $region16
        $region15: #{_masked_rnn_impl.1} parent=11 // pred_region
          _
        $region16: #{_masked_rnn_impl.1} parent=11 // pred_fallthru
          _
        // Predicated region
        $region17: #{_masked_rnn_impl.1} parent=11 // pred_check
          %p170 = pneg %p98
        $region18: #{_masked_rnn_impl.1} parent=11 // pred_check_branch
          %172 = sbr.rel (%p170) target = $region20
        $region19: #{_masked_rnn_impl.1} parent=11 // pred_region
          %p173 = scmp.lt.s32.totalorder %s20, 0
          %s174 = scalar_select %p173, %s20, 0
          %s175 = smul.addr %s174, 8
          %s176 = scalar_lea.vmem %s2, %s175
        $region20: #{_masked_rnn_impl.1} parent=11 // pred_fallthru
          _
      $region12: #{_masked_rnn_impl.1} parent=5 // pred_fallthru
        _
      %p177 = scmp.lt.s32.totalorder %s11, 4
      // Predicated region
      $region21: #{_masked_rnn_impl.1} parent=5 // pred_check
        %p178 = pneg %p177
      $region22: #{_masked_rnn_impl.1} parent=5 // pred_check_branch
        %180 = sbr.rel (%p178) target = $region24
      $region23: #{_masked_rnn_impl.1} parent=5 // pred_region
        // Predicated region
        $region25: #{_masked_rnn_impl.1} parent=23 // pred_check
          %p181 = pneg %p45
        $region26: #{_masked_rnn_impl.1} parent=23 // pred_check_branch
          %183 = sbr.rel (%p181) target = $region28
        $region27: #{_masked_rnn_impl.1} parent=23 // pred_region
          %s184 = sand.u32 %s35, 1
          %s185 = sand.u32 %s35, 1
          %s186 = smul.addr %s185, 64
          %s187 = scalar_lea.vmem [#allocation3], %s186
          %s188 = smul.u32 8, %s18
          %s189 = smul.addr %s188, 4
          %s190 = sadd.s32 %s19, %s189
          %s191 = smul.addr %s190, 8
          %s192 = scalar_lea.vmem %s0, %s191
          // Predicated region
          $region29: #{_masked_rnn_impl.1} parent=27 // pred_check
            _
          $region30: #{_masked_rnn_impl.1} parent=27 // pred_check_branch
            %194 = sbr.rel (0) target = $region32
          $region31: #{_masked_rnn_impl.1} parent=27 // pred_region
            // Predicated region
            $region33: #{_masked_rnn_impl.1} parent=31 // pred_check
              _
            $region34: #{_masked_rnn_impl.1} parent=31 // pred_check_branch
              %196 = sbr.rel (0) target = $region36
            $region35: #{_masked_rnn_impl.1} parent=31 // pred_region
              // Predicated region
              $region48: #{_masked_rnn_impl.1} parent=35 // pred_check
                _
              $region49: #{_masked_rnn_impl.1} parent=35 // pred_check_branch
                %225 = sbr.rel (0) target = $region51
              $region50: #{_masked_rnn_impl.1} parent=35 // pred_region
                loop: start=0, step=1, limit=1
                $region52: #{_masked_rnn_impl.1} parent=50 // loop_pre_header
                  _
                $region53: #{_masked_rnn_impl.1} parent=50 // loop_header
                  %s227 = sphi 0, %s231
                  %p228 = scmp.ge.s32.totalorder %s227, 1
                  %s232 = sphi %s192, %s192
                  %s233 = sphi %s187, %s187
                $region54: #{_masked_rnn_impl.1} parent=50 // loop_header_branch
                  %230 = sbr.rel (%p228) target = $region58
                $region55: #{_masked_rnn_impl.1} parent=50 // loop_body
                  %v234 = vld [vmem:[%s232] sm:$0xff]
                  %235 = vst [vmem:[%s233] sm:$0xff] %v234
                  %v236 = vld [vmem:[%s232 + $0x20] sm:$0xff]
                  %237 = vst [vmem:[%s233 + $0x8] sm:$0xff] %v236
                  %v238 = vld [vmem:[%s232 + $0x40] sm:$0xff]
                  %239 = vst [vmem:[%s233 + $0x10] sm:$0xff] %v238
                  %v240 = vld [vmem:[%s232 + $0x60] sm:$0xff]
                  %241 = vst [vmem:[%s233 + $0x18] sm:$0xff] %v240
                  %v242 = vld [vmem:[%s232 + $0x80] sm:$0xff]
                  %243 = vst [vmem:[%s233 + $0x20] sm:$0xff] %v242
                  %v244 = vld [vmem:[%s232 + $0xa0] sm:$0xff]
                  %245 = vst [vmem:[%s233 + $0x28] sm:$0xff] %v244
                  %v246 = vld [vmem:[%s232 + $0xc0] sm:$0xff]
                  %247 = vst [vmem:[%s233 + $0x30] sm:$0xff] %v246
                  %v248 = vld [vmem:[%s232 + $0xe0] sm:$0xff]
                  %249 = vst [vmem:[%s233 + $0x38] sm:$0xff] %v248
                $region56: #{_masked_rnn_impl.1} parent=50 // loop_footer
                  %s231 = sadd.s32 1, %s227
                $region57: #{_masked_rnn_impl.1} parent=50 // loop_footer_branch
                  %226 = sbr.rel target = $region53
                $region58: #{_masked_rnn_impl.1} parent=50 // loop_exit
                  _
              $region51: #{_masked_rnn_impl.1} parent=35 // pred_fallthru
                _
              // Predicated region
              $region59: #{_masked_rnn_impl.1} parent=35 // pred_check
                _
              $region60: #{_masked_rnn_impl.1} parent=35 // pred_check_branch
                %251 = sbr.rel target = $region62
              $region61: #{_masked_rnn_impl.1} parent=35 // pred_region
                _
              $region62: #{_masked_rnn_impl.1} parent=35 // pred_fallthru
                _
            $region36: #{_masked_rnn_impl.1} parent=31 // pred_fallthru
              _
            // Predicated region
            $region37: #{_masked_rnn_impl.1} parent=31 // pred_check
              _
            $region38: #{_masked_rnn_impl.1} parent=31 // pred_check_branch
              %198 = sbr.rel target = $region40
            $region39: #{_masked_rnn_impl.1} parent=31 // pred_region
              loop: start=0, step=1, limit=1
              $region41: #{_masked_rnn_impl.1} parent=39 // loop_pre_header
                _
              $region42: #{_masked_rnn_impl.1} parent=39 // loop_header
                %s201 = sphi 0, %s205
                %p202 = scmp.ge.s32.totalorder %s201, 1
                %s206 = sphi %s192, %s192
                %s207 = sphi %s187, %s187
              $region43: #{_masked_rnn_impl.1} parent=39 // loop_header_branch
                %204 = sbr.rel (%p202) target = $region47
              $region44: #{_masked_rnn_impl.1} parent=39 // loop_body
                %v208 = vld [vmem:[%s206] sm:$0xff]
                %209 = vst [vmem:[%s207] sm:$0xff] %v208
                %v210 = vld [vmem:[%s206 + $0x20] sm:$0xff]
                %211 = vst [vmem:[%s207 + $0x8] sm:$0xff] %v210
                %v212 = vld [vmem:[%s206 + $0x40] sm:$0xff]
                %213 = vst [vmem:[%s207 + $0x10] sm:$0xff] %v212
                %v214 = vld [vmem:[%s206 + $0x60] sm:$0xff]
                %215 = vst [vmem:[%s207 + $0x18] sm:$0xff] %v214
                %v216 = vld [vmem:[%s206 + $0x80] sm:$0xff]
                %217 = vst [vmem:[%s207 + $0x20] sm:$0xff] %v216
                %v218 = vld [vmem:[%s206 + $0xa0] sm:$0xff]
                %219 = vst [vmem:[%s207 + $0x28] sm:$0xff] %v218
                %v220 = vld [vmem:[%s206 + $0xc0] sm:$0xff]
                %221 = vst [vmem:[%s207 + $0x30] sm:$0xff] %v220
                %v222 = vld [vmem:[%s206 + $0xe0] sm:$0xff]
                %223 = vst [vmem:[%s207 + $0x38] sm:$0xff] %v222
              $region45: #{_masked_rnn_impl.1} parent=39 // loop_footer
                %s205 = sadd.s32 1, %s201
              $region46: #{_masked_rnn_impl.1} parent=39 // loop_footer_branch
                %200 = sbr.rel target = $region42
              $region47: #{_masked_rnn_impl.1} parent=39 // loop_exit
                _
            $region40: #{_masked_rnn_impl.1} parent=31 // pred_fallthru
              _
          $region32: #{_masked_rnn_impl.1} parent=27 // pred_fallthru
            _
          %252 = vnop
        $region28: #{_masked_rnn_impl.1} parent=23 // pred_fallthru
          _
      $region24: #{_masked_rnn_impl.1} parent=5 // pred_fallthru
        _
      %p253 = scmp.le.s32.totalorder 1, %s11
      %p254 = scmp.lt.s32.totalorder %s11, 5
      %p255 = pnand %p253, %p254
      %p256 = pneg %p255
      // Predicated region
      $region63: #{_masked_rnn_impl.1} parent=5 // pred_check
        _
      $region64: #{_masked_rnn_impl.1} parent=5 // pred_check_branch
        %258 = sbr.rel (%p255) target = $region66
      $region65: #{_masked_rnn_impl.1} parent=5 // pred_region
        %s259 = ssub.s32 %s11, 1
        %s260 = sand.u32 %s38, 1
        %s261 = sand.u32 %s38, 1
        %s262 = smul.addr %s261, 64
        %s263 = scalar_lea.vmem [#allocation3], %s262
        // Predicated region
        $region67: #{_masked_rnn_impl.1} parent=65 // pred_check
          %p264 = pneg %p51
        $region68: #{_masked_rnn_impl.1} parent=65 // pred_check_branch
          %266 = sbr.rel (%p264) target = $region70
        $region69: #{_masked_rnn_impl.1} parent=65 // pred_region
          _
        $region70: #{_masked_rnn_impl.1} parent=65 // pred_fallthru
          _
        %s267 = sand.u32 %s38, 1
        %s268 = sand.u32 %s38, 1
        %s269 = smul.addr %s268, 64
        %s270 = scalar_lea.vmem [#allocation3], %s269
        %p271 = pneg %p51
        %p272 = pneg %p48
        %p273 = pneg %p72
        %p274 = pneg %p69
        %p275 = scmp.lt.s32.totalorder %s20, 0
        %s276 = scalar_select %p275, %s20, 0
        %s277 = smul.addr %s276, 8
        %s278 = scalar_lea.vmem %s2, %s277
        %p279 = pneg %p98
        %p280 = pneg %p95
        %p281 = pneg %p126
        %p282 = pneg %p123
        %s283 = sand.u32 %s113, 1
        %s284 = sand.u32 %s113, 1
        %s285 = smul.addr %s284, 64
        %s286 = scalar_lea.vmem [#allocation4], %s285
        %p287 = pneg %p152
        %p288 = pneg %p149
        %p289 = scmp.lt.s32.totalorder %s20, 0
        %s290 = scalar_select %p289, %s20, 0
        %s291 = smul.addr %s290, 8
        %s292 = scalar_lea.vmem %s4, %s291
        %s293 = smul.u32 8, %s20
        %p294 = scmp.lt.s32.totalorder %s20, 0
        %s295 = scalar_select %p294, %s20, 0
        %s296 = smul.addr %s295, 8
        %s297 = scalar_lea.vmem %s2, %s296
        %s298 = smul.u32 8, %s20
        %p299 = scmp.lt.s32.totalorder %s20, 0
        %s300 = scalar_select %p299, %s20, 0
        %s301 = smul.addr %s300, 8
        %s302 = scalar_lea.vmem %s4, %s301
        %p303 = scmp.eq.s32.totalorder %s21, 0
        // Predicated region
        $region71: #{_masked_rnn_impl.1} parent=65 // pred_check
          %p304 = pneg %p303
        $region72: #{_masked_rnn_impl.1} parent=65 // pred_check_branch
          %306 = sbr.rel (%p304) target = $region74
        $region73: #{_masked_rnn_impl.1} parent=65 // pred_region
          %vm307 = vcmask 261120
          %308 = vst.msk [vmem:[#allocation2] sm:$0xff] %vm307, 0.0
        $region74: #{_masked_rnn_impl.1} parent=65 // pred_fallthru
          _
        %v309 = vld [vmem:[#allocation2] sm:$0xff]
        %v310 = vld [vmem:[%s1] sm:$0xff]
        %v311 = vld [vmem:[%s1 + $0x8] sm:$0xff]
        %v312 = vld [vmem:[%s1 + $0x10] sm:$0xff]
        %v313 = vld [vmem:[%s1 + $0x18] sm:$0xff]
        %v314 = vld [vmem:[%s297] sm:$0xff]
        %s315 = smul.u32 %s21, 8
        %v316 = vld [vmem:[%s263] sm:$0x1]
        %v317 = vld [vmem:[%s263 + $0x8] sm:$0x1]
        %v318 = vld [vmem:[%s263 + $0x10] sm:$0x1]
        %v319 = vld [vmem:[%s263 + $0x18] sm:$0x1]
        %v320 = vld [vmem:[%s263 + $0x20] sm:$0x1]
        %v321 = vld [vmem:[%s263 + $0x28] sm:$0x1]
        %v322 = vld [vmem:[%s263 + $0x30] sm:$0x1]
        %v323 = vld [vmem:[%s263 + $0x38] sm:$0x1]
        %vm324 = vcmask 261120
        %v326 = vsel %vm324, %v309, 0
        %328 = vmatprep.subr.mxu0 0.0
        %329 = vmatpush1.msra.mxu0 %v310
        %330 = vmatprep.subr.mxu0 0.0
        %331 = vmatpush1.msra.mxu0 %v311
        %332 = vmatprep.subr.mxu0 0.0
        %333 = vmatpush1.msra.mxu0 %v312
        %334 = vmatprep.subr.mxu0 0.0
        %335 = vmatpush1.msra.mxu0 %v313
        %336 = vmatprep.subr.mxu0 0.0
        %337 = vmatpush1.msra.mxu0 0.0
        %338 = vmatprep.subr.mxu0 0.0
        %339 = vmatpush1.msra.mxu0 0.0
        %340 = vmatprep.subr.mxu0 0.0
        %341 = vmatpush1.msra.mxu0 0.0
        %342 = vmatprep.subr.mxu0 0.0
        %343 = vmatpush1.msra.mxu0 0.0
        %344 = vmatprep.subr.mxu0 0.0
        %345 = vmatpush1.msra.mxu0 0.0
        %346 = vmatprep.subr.mxu0 0.0
        %347 = vmatpush1.msra.mxu0 0.0
        %348 = vmatprep.subr.mxu0 0.0
        %349 = vmatpush1.msra.mxu0 0.0
        %350 = vmatprep.subr.mxu0 0.0
        %351 = vmatpush1.msra.mxu0 0.0
        %352 = vmatprep.subr.mxu0 0.0
        %353 = vmatpush1.msra.mxu0 0.0
        %354 = vmatprep.subr.mxu0 0.0
        %355 = vmatpush1.msra.mxu0 0.0
        %356 = vmatprep.subr.mxu0 0.0
        %357 = vmatpush1.msra.mxu0 0.0
        %358 = vmatprep.subr.mxu0 0.0
        %359 = vmatpush1.msra.mxu0 0.0
        %360 = vmatprep.subr.mxu0 0.0
        %361 = vmatpush1.msra.mxu0 0.0
        %362 = vmatprep.subr.mxu0 0.0
        %363 = vmatpush1.msra.mxu0 0.0
        %364 = vmatprep.subr.mxu0 0.0
        %365 = vmatpush1.msra.mxu0 0.0
        %366 = vmatprep.subr.mxu0 0.0
        %367 = vmatpush1.msra.mxu0 0.0
        %368 = vmatprep.subr.mxu0 0.0
        %369 = vmatpush1.msra.mxu0 0.0
        %370 = vmatprep.subr.mxu0 0.0
        %371 = vmatpush1.msra.mxu0 0.0
        %372 = vmatprep.subr.mxu0 0.0
        %373 = vmatpush1.msra.mxu0 0.0
        %374 = vmatprep.subr.mxu0 0.0
        %375 = vmatpush1.msra.mxu0 0.0
        %376 = vmatprep.subr.mxu0 0.0
        %377 = vmatpush1.msra.mxu0 0.0
        %378 = vmatprep.subr.mxu0 0.0
        %379 = vmatpush1.msra.mxu0 0.0
        %380 = vmatprep.subr.mxu0 0.0
        %381 = vmatpush1.msra.mxu0 0.0
        %382 = vmatprep.subr.mxu0 0.0
        %383 = vmatpush1.msra.mxu0 0.0
        %384 = vmatprep.subr.mxu0 0.0
        %385 = vmatpush1.msra.mxu0 0.0
        %386 = vmatprep.subr.mxu0 0.0
        %387 = vmatpush1.msra.mxu0 0.0
        %388 = vmatprep.subr.mxu0 0.0
        %389 = vmatpush1.msra.mxu0 0.0
        %390 = vmatprep.subr.mxu0 0.0
        %391 = vmatpush1.msra.mxu0 0.0
        %392 = vmatprep.mubr.f32.mxu0 0.0
        %393 = vmatmul.mubr.f32.gmra.mrb[0].mxu0 %v326
        %v394 = vpop.f32.mrb[0].mxu0
        %v395 = vadd.f32 0.0, %v394
        %v396 = vpop.f32.mrb[0].mxu0
        %397 = vdwg.mxu0
        %v399 = vrot.slane %v395, 1
        %v400 = vrot.slane %v395, 2
        %v401 = vrot.slane %v395, 3
        %v402 = vrot.slane %v395, 4
        %v403 = vrot.slane %v395, 5
        %v404 = vrot.slane %v395, 6
        %v405 = vrot.slane %v395, 7
        %v414 = vadd.f32 %v316, %v395
        %v415 = vadd.f32 %v317, %v399
        %v416 = vadd.f32 %v318, %v400
        %v417 = vadd.f32 %v319, %v401
        %v418 = vadd.f32 %v320, %v402
        %v419 = vadd.f32 %v321, %v403
        %v420 = vadd.f32 %v322, %v404
        %v421 = vadd.f32 %v323, %v405
        %v422 = vtanh.pop %v414
        %v423 = vtanh.pop %v415
        %v424 = vtanh.pop %v416
        %v425 = vtanh.pop %v417
        %v426 = vtanh.pop %v418
        %v427 = vtanh.pop %v419
        %v428 = vtanh.pop %v420
        %v429 = vtanh.pop %v421
        %s430 = scvt.s32.f32 %s315
        %v431 = vstv %s430
        %vm432 = vcmp.gt.f32.partialorder %v314, %v431
        %v433 = vsel %vm432, 1, 0
        %v434 = vcvt.s32.f32 %v433
        %436 = vset.pattern.permute.xlu0 0
        %437 = vperm.xlu0 %436, %v434
        %v438 = vpop.permute.xlu0 %437
        %v448 = vrot.slane %v423, 7
        %vm449 = vcmask 1041409
        %v450 = vsel %vm449, %v448, %v422
        %v451 = vrot.slane %v424, 6
        %vm452 = vcmask 1042434
        %v453 = vsel %vm452, %v451, %v450
        %v454 = vrot.slane %v425, 5
        %vm455 = vcmask 1043459
        %v456 = vsel %vm455, %v454, %v453
        %v457 = vrot.slane %v426, 4
        %vm458 = vcmask 1044484
        %v459 = vsel %vm458, %v457, %v456
        %v460 = vrot.slane %v427, 3
        %vm461 = vcmask 1045509
        %v462 = vsel %vm461, %v460, %v459
        %v463 = vrot.slane %v428, 2
        %vm464 = vcmask 1046534
        %v465 = vsel %vm464, %v463, %v462
        %v466 = vrot.slane %v429, 1
        %vm467 = vcmask 1047559
        %v468 = vsel %vm467, %v466, %v465
        %v470 = vmul.f32 %v438, %v468
        %v471 = vsub.f32 1.0, %v434
        %473 = vset.pattern.permute.xlu0 0
        %474 = vperm.xlu0 %473, %v471
        %v475 = vpop.permute.xlu0 %474
        %v477 = vmul.f32 %v475, %v309
        %v478 = vadd.f32 %v470, %v477
        %v480 = vcombine.high %v470, %v470
        %v482 = vunpack.c.l.s4 1966171168
        %v483 = vunpack.c.0.s8 %v482
        %v484 = vlaneseq
        %v485 = vshrl.u32 %v484, 7
        %v486 = vsub.s32 %v483, %v485
        %v487 = vrot.slane %v470, %v486
        %v489 = vunpack.c.l.s4 1966171168
        %v490 = vunpack.c.0.s8 %v489
        %v491 = vlaneseq
        %v492 = vshrl.u32 %v491, 7
        %v493 = vsub.s32 %v490, %v492
        %v494 = vrot.slane %v480, %v493
        %v495 = vcombine.high %v487, %v487
        %v496 = vcombine.high %v494, %v494
        %v498 = vunpack.c.l.s4 1966171168
        %v499 = vunpack.c.0.s8 %v498
        %v500 = vlaneseq
        %v501 = vshrl.u32 %v500, 7
        %v502 = vsub.s32 %v499, %v501
        %v503 = vrot.slane %v487, %v502
        %v505 = vunpack.c.l.s4 1966171168
        %v506 = vunpack.c.0.s8 %v505
        %v507 = vlaneseq
        %v508 = vshrl.u32 %v507, 7
        %v509 = vsub.s32 %v506, %v508
        %v510 = vrot.slane %v494, %v509
        %v512 = vunpack.c.l.s4 1966171168
        %v513 = vunpack.c.0.s8 %v512
        %v514 = vlaneseq
        %v515 = vshrl.u32 %v514, 7
        %v516 = vsub.s32 %v513, %v515
        %v517 = vrot.slane %v495, %v516
        %v519 = vunpack.c.l.s4 1966171168
        %v520 = vunpack.c.0.s8 %v519
        %v521 = vlaneseq
        %v522 = vshrl.u32 %v521, 7
        %v523 = vsub.s32 %v520, %v522
        %v524 = vrot.slane %v496, %v523
        %v525 = vcombine.high %v503, %v503
        %v526 = vcombine.high %v510, %v510
        %v527 = vcombine.high %v517, %v517
        %v528 = vcombine.high %v524, %v524
        %vm537 = vcmask 253952
        %538 = vst.msk [vmem:[%s286] sm:$0x1] %vm537, %v503
        %539 = vst.msk [vmem:[%s286 + $0x8] sm:$0x1] %vm537, %v517
        %540 = vst.msk [vmem:[%s286 + $0x10] sm:$0x1] %vm537, %v525
        %541 = vst.msk [vmem:[%s286 + $0x18] sm:$0x1] %vm537, %v527
        %542 = vst.msk [vmem:[%s286 + $0x20] sm:$0x1] %vm537, %v510
        %543 = vst.msk [vmem:[%s286 + $0x28] sm:$0x1] %vm537, %v524
        %544 = vst.msk [vmem:[%s286 + $0x30] sm:$0x1] %vm537, %v526
        %545 = vst.msk [vmem:[%s286 + $0x38] sm:$0x1] %vm537, %v528
        %v546 = vld [vmem:[%s263 + $0x1] sm:$0x1]
        %v547 = vld [vmem:[%s263 + $0x9] sm:$0x1]
        %v548 = vld [vmem:[%s263 + $0x11] sm:$0x1]
        %v549 = vld [vmem:[%s263 + $0x19] sm:$0x1]
        %v550 = vld [vmem:[%s263 + $0x21] sm:$0x1]
        %v551 = vld [vmem:[%s263 + $0x29] sm:$0x1]
        %v552 = vld [vmem:[%s263 + $0x31] sm:$0x1]
        %v553 = vld [vmem:[%s263 + $0x39] sm:$0x1]
        %v555 = vsel %vm324, %v478, 0
        %557 = vmatprep.subr.mxu0 0.0
        %558 = vmatpush1.msra.mxu0 %v310
        %559 = vmatprep.subr.mxu0 0.0
        %560 = vmatpush1.msra.mxu0 %v311
        %561 = vmatprep.subr.mxu0 0.0
        %562 = vmatpush1.msra.mxu0 %v312
        %563 = vmatprep.subr.mxu0 0.0
        %564 = vmatpush1.msra.mxu0 %v313
        %565 = vmatprep.subr.mxu0 0.0
        %566 = vmatpush1.msra.mxu0 0.0
        %567 = vmatprep.subr.mxu0 0.0
        %568 = vmatpush1.msra.mxu0 0.0
        %569 = vmatprep.subr.mxu0 0.0
        %570 = vmatpush1.msra.mxu0 0.0
        %571 = vmatprep.subr.mxu0 0.0
        %572 = vmatpush1.msra.mxu0 0.0
        %573 = vmatprep.subr.mxu0 0.0
        %574 = vmatpush1.msra.mxu0 0.0
        %575 = vmatprep.subr.mxu0 0.0
        %576 = vmatpush1.msra.mxu0 0.0
        %577 = vmatprep.subr.mxu0 0.0
        %578 = vmatpush1.msra.mxu0 0.0
        %579 = vmatprep.subr.mxu0 0.0
        %580 = vmatpush1.msra.mxu0 0.0
        %581 = vmatprep.subr.mxu0 0.0
        %582 = vmatpush1.msra.mxu0 0.0
        %583 = vmatprep.subr.mxu0 0.0
        %584 = vmatpush1.msra.mxu0 0.0
        %585 = vmatprep.subr.mxu0 0.0
        %586 = vmatpush1.msra.mxu0 0.0
        %587 = vmatprep.subr.mxu0 0.0
        %588 = vmatpush1.msra.mxu0 0.0
        %589 = vmatprep.subr.mxu0 0.0
        %590 = vmatpush1.msra.mxu0 0.0
        %591 = vmatprep.subr.mxu0 0.0
        %592 = vmatpush1.msra.mxu0 0.0
        %593 = vmatprep.subr.mxu0 0.0
        %594 = vmatpush1.msra.mxu0 0.0
        %595 = vmatprep.subr.mxu0 0.0
        %596 = vmatpush1.msra.mxu0 0.0
        %597 = vmatprep.subr.mxu0 0.0
        %598 = vmatpush1.msra.mxu0 0.0
        %599 = vmatprep.subr.mxu0 0.0
        %600 = vmatpush1.msra.mxu0 0.0
        %601 = vmatprep.subr.mxu0 0.0
        %602 = vmatpush1.msra.mxu0 0.0
        %603 = vmatprep.subr.mxu0 0.0
        %604 = vmatpush1.msra.mxu0 0.0
        %605 = vmatprep.subr.mxu0 0.0
        %606 = vmatpush1.msra.mxu0 0.0
        %607 = vmatprep.subr.mxu0 0.0
        %608 = vmatpush1.msra.mxu0 0.0
        %609 = vmatprep.subr.mxu0 0.0
        %610 = vmatpush1.msra.mxu0 0.0
        %611 = vmatprep.subr.mxu0 0.0
        %612 = vmatpush1.msra.mxu0 0.0
        %613 = vmatprep.subr.mxu0 0.0
        %614 = vmatpush1.msra.mxu0 0.0
        %615 = vmatprep.subr.mxu0 0.0
        %616 = vmatpush1.msra.mxu0 0.0
        %617 = vmatprep.subr.mxu0 0.0
        %618 = vmatpush1.msra.mxu0 0.0
        %619 = vmatprep.subr.mxu0 0.0
        %620 = vmatpush1.msra.mxu0 0.0
        %621 = vmatprep.mubr.f32.mxu0 0.0
        %622 = vmatmul.mubr.f32.gmra.mrb[0].mxu0 %v555
        %v623 = vpop.f32.mrb[0].mxu0
        %v624 = vadd.f32 0.0, %v623
        %v625 = vpop.f32.mrb[0].mxu0
        %626 = vdwg.mxu0
        %v628 = vrot.slane %v624, 1
        %v629 = vrot.slane %v624, 2
        %v630 = vrot.slane %v624, 3
        %v631 = vrot.slane %v624, 4
        %v632 = vrot.slane %v624, 5
        %v633 = vrot.slane %v624, 6
        %v634 = vrot.slane %v624, 7
        %v643 = vadd.f32 %v546, %v624
        %v644 = vadd.f32 %v547, %v628
        %v645 = vadd.f32 %v548, %v629
        %v646 = vadd.f32 %v549, %v630
        %v647 = vadd.f32 %v550, %v631
        %v648 = vadd.f32 %v551, %v632
        %v649 = vadd.f32 %v552, %v633
        %v650 = vadd.f32 %v553, %v634
        %v651 = vtanh.pop %v643
        %v652 = vtanh.pop %v644
        %v653 = vtanh.pop %v645
        %v654 = vtanh.pop %v646
        %v655 = vtanh.pop %v647
        %v656 = vtanh.pop %v648
        %v657 = vtanh.pop %v649
        %v658 = vtanh.pop %v650
        %s659 = sadd.s32 %s315, 1
        %s660 = scvt.s32.f32 %s659
        %v661 = vstv %s660
        %vm662 = vcmp.gt.f32.partialorder %v314, %v661
        %v663 = vsel %vm662, 1, 0
        %v664 = vcvt.s32.f32 %v663
        %666 = vset.pattern.permute.xlu0 0
        %667 = vperm.xlu0 %666, %v664
        %v668 = vpop.permute.xlu0 %667
        %v678 = vrot.slane %v652, 7
        %v679 = vsel %vm449, %v678, %v651
        %v680 = vrot.slane %v653, 6
        %v681 = vsel %vm452, %v680, %v679
        %v682 = vrot.slane %v654, 5
        %v683 = vsel %vm455, %v682, %v681
        %v684 = vrot.slane %v655, 4
        %v685 = vsel %vm458, %v684, %v683
        %v686 = vrot.slane %v656, 3
        %v687 = vsel %vm461, %v686, %v685
        %v688 = vrot.slane %v657, 2
        %v689 = vsel %vm464, %v688, %v687
        %v690 = vrot.slane %v658, 1
        %v691 = vsel %vm467, %v690, %v689
        %v693 = vmul.f32 %v668, %v691
        %v694 = vsub.f32 1.0, %v664
        %696 = vset.pattern.permute.xlu0 0
        %697 = vperm.xlu0 %696, %v694
        %v698 = vpop.permute.xlu0 %697
        %v700 = vmul.f32 %v698, %v478
        %v701 = vadd.f32 %v693, %v700
        %v703 = vcombine.high %v693, %v693
        %v705 = vunpack.c.l.s4 1966171168
        %v706 = vunpack.c.0.s8 %v705
        %v707 = vlaneseq
        %v708 = vshrl.u32 %v707, 7
        %v709 = vsub.s32 %v706, %v708
        %v710 = vrot.slane %v693, %v709
        %v712 = vunpack.c.l.s4 1966171168
        %v713 = vunpack.c.0.s8 %v712
        %v714 = vlaneseq
        %v715 = vshrl.u32 %v714, 7
        %v716 = vsub.s32 %v713, %v715
        %v717 = vrot.slane %v703, %v716
        %v718 = vcombine.high %v710, %v710
        %v719 = vcombine.high %v717, %v717
        %v721 = vunpack.c.l.s4 1966171168
        %v722 = vunpack.c.0.s8 %v721
        %v723 = vlaneseq
        %v724 = vshrl.u32 %v723, 7
        %v725 = vsub.s32 %v722, %v724
        %v726 = vrot.slane %v710, %v725
        %v728 = vunpack.c.l.s4 1966171168
        %v729 = vunpack.c.0.s8 %v728
        %v730 = vlaneseq
        %v731 = vshrl.u32 %v730, 7
        %v732 = vsub.s32 %v729, %v731
        %v733 = vrot.slane %v717, %v732
        %v735 = vunpack.c.l.s4 1966171168
        %v736 = vunpack.c.0.s8 %v735
        %v737 = vlaneseq
        %v738 = vshrl.u32 %v737, 7
        %v739 = vsub.s32 %v736, %v738
        %v740 = vrot.slane %v718, %v739
        %v742 = vunpack.c.l.s4 1966171168
        %v743 = vunpack.c.0.s8 %v742
        %v744 = vlaneseq
        %v745 = vshrl.u32 %v744, 7
        %v746 = vsub.s32 %v743, %v745
        %v747 = vrot.slane %v719, %v746
        %v748 = vcombine.high %v726, %v726
        %v749 = vcombine.high %v733, %v733
        %v750 = vcombine.high %v740, %v740
        %v751 = vcombine.high %v747, %v747
        %760 = vst.msk [vmem:[%s286 + $0x1] sm:$0x1] %vm537, %v726
        %761 = vst.msk [vmem:[%s286 + $0x9] sm:$0x1] %vm537, %v740
        %762 = vst.msk [vmem:[%s286 + $0x11] sm:$0x1] %vm537, %v748
        %763 = vst.msk [vmem:[%s286 + $0x19] sm:$0x1] %vm537, %v750
        %764 = vst.msk [vmem:[%s286 + $0x21] sm:$0x1] %vm537, %v733
        %765 = vst.msk [vmem:[%s286 + $0x29] sm:$0x1] %vm537, %v747
        %766 = vst.msk [vmem:[%s286 + $0x31] sm:$0x1] %vm537, %v749
        %767 = vst.msk [vmem:[%s286 + $0x39] sm:$0x1] %vm537, %v751
        %v768 = vld [vmem:[%s263 + $0x2] sm:$0x1]
        %v769 = vld [vmem:[%s263 + $0xa] sm:$0x1]
        %v770 = vld [vmem:[%s263 + $0x12] sm:$0x1]
        %v771 = vld [vmem:[%s263 + $0x1a] sm:$0x1]
        %v772 = vld [vmem:[%s263 + $0x22] sm:$0x1]
        %v773 = vld [vmem:[%s263 + $0x2a] sm:$0x1]
        %v774 = vld [vmem:[%s263 + $0x32] sm:$0x1]
        %v775 = vld [vmem:[%s263 + $0x3a] sm:$0x1]
        %v777 = vsel %vm324, %v701, 0
        %779 = vmatprep.subr.mxu0 0.0
        %780 = vmatpush1.msra.mxu0 %v310
        %781 = vmatprep.subr.mxu0 0.0
        %782 = vmatpush1.msra.mxu0 %v311
        %783 = vmatprep.subr.mxu0 0.0
        %784 = vmatpush1.msra.mxu0 %v312
        %785 = vmatprep.subr.mxu0 0.0
        %786 = vmatpush1.msra.mxu0 %v313
        %787 = vmatprep.subr.mxu0 0.0
        %788 = vmatpush1.msra.mxu0 0.0
        %789 = vmatprep.subr.mxu0 0.0
        %790 = vmatpush1.msra.mxu0 0.0
        %791 = vmatprep.subr.mxu0 0.0
        %792 = vmatpush1.msra.mxu0 0.0
        %793 = vmatprep.subr.mxu0 0.0
        %794 = vmatpush1.msra.mxu0 0.0
        %795 = vmatprep.subr.mxu0 0.0
        %796 = vmatpush1.msra.mxu0 0.0
        %797 = vmatprep.subr.mxu0 0.0
        %798 = vmatpush1.msra.mxu0 0.0
        %799 = vmatprep.subr.mxu0 0.0
        %800 = vmatpush1.msra.mxu0 0.0
        %801 = vmatprep.subr.mxu0 0.0
        %802 = vmatpush1.msra.mxu0 0.0
        %803 = vmatprep.subr.mxu0 0.0
        %804 = vmatpush1.msra.mxu0 0.0
        %805 = vmatprep.subr.mxu0 0.0
        %806 = vmatpush1.msra.mxu0 0.0
        %807 = vmatprep.subr.mxu0 0.0
        %808 = vmatpush1.msra.mxu0 0.0
        %809 = vmatprep.subr.mxu0 0.0
        %810 = vmatpush1.msra.mxu0 0.0
        %811 = vmatprep.subr.mxu0 0.0
        %812 = vmatpush1.msra.mxu0 0.0
        %813 = vmatprep.subr.mxu0 0.0
        %814 = vmatpush1.msra.mxu0 0.0
        %815 = vmatprep.subr.mxu0 0.0
        %816 = vmatpush1.msra.mxu0 0.0
        %817 = vmatprep.subr.mxu0 0.0
        %818 = vmatpush1.msra.mxu0 0.0
        %819 = vmatprep.subr.mxu0 0.0
        %820 = vmatpush1.msra.mxu0 0.0
        %821 = vmatprep.subr.mxu0 0.0
        %822 = vmatpush1.msra.mxu0 0.0
        %823 = vmatprep.subr.mxu0 0.0
        %824 = vmatpush1.msra.mxu0 0.0
        %825 = vmatprep.subr.mxu0 0.0
        %826 = vmatpush1.msra.mxu0 0.0
        %827 = vmatprep.subr.mxu0 0.0
        %828 = vmatpush1.msra.mxu0 0.0
        %829 = vmatprep.subr.mxu0 0.0
        %830 = vmatpush1.msra.mxu0 0.0
        %831 = vmatprep.subr.mxu0 0.0
        %832 = vmatpush1.msra.mxu0 0.0
        %833 = vmatprep.subr.mxu0 0.0
        %834 = vmatpush1.msra.mxu0 0.0
        %835 = vmatprep.subr.mxu0 0.0
        %836 = vmatpush1.msra.mxu0 0.0
        %837 = vmatprep.subr.mxu0 0.0
        %838 = vmatpush1.msra.mxu0 0.0
        %839 = vmatprep.subr.mxu0 0.0
        %840 = vmatpush1.msra.mxu0 0.0
        %841 = vmatprep.subr.mxu0 0.0
        %842 = vmatpush1.msra.mxu0 0.0
        %843 = vmatprep.mubr.f32.mxu0 0.0
        %844 = vmatmul.mubr.f32.gmra.mrb[0].mxu0 %v777
        %v845 = vpop.f32.mrb[0].mxu0
        %v846 = vadd.f32 0.0, %v845
        %v847 = vpop.f32.mrb[0].mxu0
        %848 = vdwg.mxu0
        %v850 = vrot.slane %v846, 1
        %v851 = vrot.slane %v846, 2
        %v852 = vrot.slane %v846, 3
        %v853 = vrot.slane %v846, 4
        %v854 = vrot.slane %v846, 5
        %v855 = vrot.slane %v846, 6
        %v856 = vrot.slane %v846, 7
        %v865 = vadd.f32 %v768, %v846
        %v866 = vadd.f32 %v769, %v850
        %v867 = vadd.f32 %v770, %v851
        %v868 = vadd.f32 %v771, %v852
        %v869 = vadd.f32 %v772, %v853
        %v870 = vadd.f32 %v773, %v854
        %v871 = vadd.f32 %v774, %v855
        %v872 = vadd.f32 %v775, %v856
        %v873 = vtanh.pop %v865
        %v874 = vtanh.pop %v866
        %v875 = vtanh.pop %v867
        %v876 = vtanh.pop %v868
        %v877 = vtanh.pop %v869
        %v878 = vtanh.pop %v870
        %v879 = vtanh.pop %v871
        %v880 = vtanh.pop %v872
        %s881 = sadd.s32 %s315, 2
        %s882 = scvt.s32.f32 %s881
        %v883 = vstv %s882
        %vm884 = vcmp.gt.f32.partialorder %v314, %v883
        %v885 = vsel %vm884, 1, 0
        %v886 = vcvt.s32.f32 %v885
        %888 = vset.pattern.permute.xlu0 0
        %889 = vperm.xlu0 %888, %v886
        %v890 = vpop.permute.xlu0 %889
        %v900 = vrot.slane %v874, 7
        %v901 = vsel %vm449, %v900, %v873
        %v902 = vrot.slane %v875, 6
        %v903 = vsel %vm452, %v902, %v901
        %v904 = vrot.slane %v876, 5
        %v905 = vsel %vm455, %v904, %v903
        %v906 = vrot.slane %v877, 4
        %v907 = vsel %vm458, %v906, %v905
        %v908 = vrot.slane %v878, 3
        %v909 = vsel %vm461, %v908, %v907
        %v910 = vrot.slane %v879, 2
        %v911 = vsel %vm464, %v910, %v909
        %v912 = vrot.slane %v880, 1
        %v913 = vsel %vm467, %v912, %v911
        %v915 = vmul.f32 %v890, %v913
        %v916 = vsub.f32 1.0, %v886
        %918 = vset.pattern.permute.xlu0 0
        %919 = vperm.xlu0 %918, %v916
        %v920 = vpop.permute.xlu0 %919
        %v922 = vmul.f32 %v920, %v701
        %v923 = vadd.f32 %v915, %v922
        %v925 = vcombine.high %v915, %v915
        %v927 = vunpack.c.l.s4 1966171168
        %v928 = vunpack.c.0.s8 %v927
        %v929 = vlaneseq
        %v930 = vshrl.u32 %v929, 7
        %v931 = vsub.s32 %v928, %v930
        %v932 = vrot.slane %v915, %v931
        %v934 = vunpack.c.l.s4 1966171168
        %v935 = vunpack.c.0.s8 %v934
        %v936 = vlaneseq
        %v937 = vshrl.u32 %v936, 7
        %v938 = vsub.s32 %v935, %v937
        %v939 = vrot.slane %v925, %v938
        %v940 = vcombine.high %v932, %v932
        %v941 = vcombine.high %v939, %v939
        %v943 = vunpack.c.l.s4 1966171168
        %v944 = vunpack.c.0.s8 %v943
        %v945 = vlaneseq
        %v946 = vshrl.u32 %v945, 7
        %v947 = vsub.s32 %v944, %v946
        %v948 = vrot.slane %v932, %v947
        %v950 = vunpack.c.l.s4 1966171168
        %v951 = vunpack.c.0.s8 %v950
        %v952 = vlaneseq
        %v953 = vshrl.u32 %v952, 7
        %v954 = vsub.s32 %v951, %v953
        %v955 = vrot.slane %v939, %v954
        %v957 = vunpack.c.l.s4 1966171168
        %v958 = vunpack.c.0.s8 %v957
        %v959 = vlaneseq
        %v960 = vshrl.u32 %v959, 7
        %v961 = vsub.s32 %v958, %v960
        %v962 = vrot.slane %v940, %v961
        %v964 = vunpack.c.l.s4 1966171168
        %v965 = vunpack.c.0.s8 %v964
        %v966 = vlaneseq
        %v967 = vshrl.u32 %v966, 7
        %v968 = vsub.s32 %v965, %v967
        %v969 = vrot.slane %v941, %v968
        %v970 = vcombine.high %v948, %v948
        %v971 = vcombine.high %v955, %v955
        %v972 = vcombine.high %v962, %v962
        %v973 = vcombine.high %v969, %v969
        %982 = vst.msk [vmem:[%s286 + $0x2] sm:$0x1] %vm537, %v948
        %983 = vst.msk [vmem:[%s286 + $0xa] sm:$0x1] %vm537, %v962
        %984 = vst.msk [vmem:[%s286 + $0x12] sm:$0x1] %vm537, %v970
        %985 = vst.msk [vmem:[%s286 + $0x1a] sm:$0x1] %vm537, %v972
        %986 = vst.msk [vmem:[%s286 + $0x22] sm:$0x1] %vm537, %v955
        %987 = vst.msk [vmem:[%s286 + $0x2a] sm:$0x1] %vm537, %v969
        %988 = vst.msk [vmem:[%s286 + $0x32] sm:$0x1] %vm537, %v971
        %989 = vst.msk [vmem:[%s286 + $0x3a] sm:$0x1] %vm537, %v973
        %v990 = vld [vmem:[%s263 + $0x3] sm:$0x1]
        %v991 = vld [vmem:[%s263 + $0xb] sm:$0x1]
        %v992 = vld [vmem:[%s263 + $0x13] sm:$0x1]
        %v993 = vld [vmem:[%s263 + $0x1b] sm:$0x1]
        %v994 = vld [vmem:[%s263 + $0x23] sm:$0x1]
        %v995 = vld [vmem:[%s263 + $0x2b] sm:$0x1]
        %v996 = vld [vmem:[%s263 + $0x33] sm:$0x1]
        %v997 = vld [vmem:[%s263 + $0x3b] sm:$0x1]
        %v999 = vsel %vm324, %v923, 0
        %1001 = vmatprep.subr.mxu0 0.0
        %1002 = vmatpush1.msra.mxu0 %v310
        %1003 = vmatprep.subr.mxu0 0.0
        %1004 = vmatpush1.msra.mxu0 %v311
        %1005 = vmatprep.subr.mxu0 0.0
        %1006 = vmatpush1.msra.mxu0 %v312
        %1007 = vmatprep.subr.mxu0 0.0
        %1008 = vmatpush1.msra.mxu0 %v313
        %1009 = vmatprep.subr.mxu0 0.0
        %1010 = vmatpush1.msra.mxu0 0.0
        %1011 = vmatprep.subr.mxu0 0.0
        %1012 = vmatpush1.msra.mxu0 0.0
        %1013 = vmatprep.subr.mxu0 0.0
        %1014 = vmatpush1.msra.mxu0 0.0
        %1015 = vmatprep.subr.mxu0 0.0
        %1016 = vmatpush1.msra.mxu0 0.0
        %1017 = vmatprep.subr.mxu0 0.0
        %1018 = vmatpush1.msra.mxu0 0.0
        %1019 = vmatprep.subr.mxu0 0.0
        %1020 = vmatpush1.msra.mxu0 0.0
        %1021 = vmatprep.subr.mxu0 0.0
        %1022 = vmatpush1.msra.mxu0 0.0
        %1023 = vmatprep.subr.mxu0 0.0
        %1024 = vmatpush1.msra.mxu0 0.0
        %1025 = vmatprep.subr.mxu0 0.0
        %1026 = vmatpush1.msra.mxu0 0.0
        %1027 = vmatprep.subr.mxu0 0.0
        %1028 = vmatpush1.msra.mxu0 0.0
        %1029 = vmatprep.subr.mxu0 0.0
        %1030 = vmatpush1.msra.mxu0 0.0
        %1031 = vmatprep.subr.mxu0 0.0
        %1032 = vmatpush1.msra.mxu0 0.0
        %1033 = vmatprep.subr.mxu0 0.0
        %1034 = vmatpush1.msra.mxu0 0.0
        %1035 = vmatprep.subr.mxu0 0.0
        %1036 = vmatpush1.msra.mxu0 0.0
        %1037 = vmatprep.subr.mxu0 0.0
        %1038 = vmatpush1.msra.mxu0 0.0
        %1039 = vmatprep.subr.mxu0 0.0
        %1040 = vmatpush1.msra.mxu0 0.0
        %1041 = vmatprep.subr.mxu0 0.0
        %1042 = vmatpush1.msra.mxu0 0.0
        %1043 = vmatprep.subr.mxu0 0.0
        %1044 = vmatpush1.msra.mxu0 0.0
        %1045 = vmatprep.subr.mxu0 0.0
        %1046 = vmatpush1.msra.mxu0 0.0
        %1047 = vmatprep.subr.mxu0 0.0
        %1048 = vmatpush1.msra.mxu0 0.0
        %1049 = vmatprep.subr.mxu0 0.0
        %1050 = vmatpush1.msra.mxu0 0.0
        %1051 = vmatprep.subr.mxu0 0.0
        %1052 = vmatpush1.msra.mxu0 0.0
        %1053 = vmatprep.subr.mxu0 0.0
        %1054 = vmatpush1.msra.mxu0 0.0
        %1055 = vmatprep.subr.mxu0 0.0
        %1056 = vmatpush1.msra.mxu0 0.0
        %1057 = vmatprep.subr.mxu0 0.0
        %1058 = vmatpush1.msra.mxu0 0.0
        %1059 = vmatprep.subr.mxu0 0.0
        %1060 = vmatpush1.msra.mxu0 0.0
        %1061 = vmatprep.subr.mxu0 0.0
        %1062 = vmatpush1.msra.mxu0 0.0
        %1063 = vmatprep.subr.mxu0 0.0
        %1064 = vmatpush1.msra.mxu0 0.0
        %1065 = vmatprep.mubr.f32.mxu0 0.0
        %1066 = vmatmul.mubr.f32.gmra.mrb[0].mxu0 %v999
        %v1067 = vpop.f32.mrb[0].mxu0
        %v1068 = vadd.f32 0.0, %v1067
        %v1069 = vpop.f32.mrb[0].mxu0
        %1070 = vdwg.mxu0
        %v1072 = vrot.slane %v1068, 1
        %v1073 = vrot.slane %v1068, 2
        %v1074 = vrot.slane %v1068, 3
        %v1075 = vrot.slane %v1068, 4
        %v1076 = vrot.slane %v1068, 5
        %v1077 = vrot.slane %v1068, 6
        %v1078 = vrot.slane %v1068, 7
        %v1087 = vadd.f32 %v990, %v1068
        %v1088 = vadd.f32 %v991, %v1072
        %v1089 = vadd.f32 %v992, %v1073
        %v1090 = vadd.f32 %v993, %v1074
        %v1091 = vadd.f32 %v994, %v1075
        %v1092 = vadd.f32 %v995, %v1076
        %v1093 = vadd.f32 %v996, %v1077
        %v1094 = vadd.f32 %v997, %v1078
        %v1095 = vtanh.pop %v1087
        %v1096 = vtanh.pop %v1088
        %v1097 = vtanh.pop %v1089
        %v1098 = vtanh.pop %v1090
        %v1099 = vtanh.pop %v1091
        %v1100 = vtanh.pop %v1092
        %v1101 = vtanh.pop %v1093
        %v1102 = vtanh.pop %v1094
        %s1103 = sadd.s32 %s315, 3
        %s1104 = scvt.s32.f32 %s1103
        %v1105 = vstv %s1104
        %vm1106 = vcmp.gt.f32.partialorder %v314, %v1105
        %v1107 = vsel %vm1106, 1, 0
        %v1108 = vcvt.s32.f32 %v1107
        %1110 = vset.pattern.permute.xlu0 0
        %1111 = vperm.xlu0 %1110, %v1108
        %v1112 = vpop.permute.xlu0 %1111
        %v1122 = vrot.slane %v1096, 7
        %v1123 = vsel %vm449, %v1122, %v1095
        %v1124 = vrot.slane %v1097, 6
        %v1125 = vsel %vm452, %v1124, %v1123
        %v1126 = vrot.slane %v1098, 5
        %v1127 = vsel %vm455, %v1126, %v1125
        %v1128 = vrot.slane %v1099, 4
        %v1129 = vsel %vm458, %v1128, %v1127
        %v1130 = vrot.slane %v1100, 3
        %v1131 = vsel %vm461, %v1130, %v1129
        %v1132 = vrot.slane %v1101, 2
        %v1133 = vsel %vm464, %v1132, %v1131
        %v1134 = vrot.slane %v1102, 1
        %v1135 = vsel %vm467, %v1134, %v1133
        %v1137 = vmul.f32 %v1112, %v1135
        %v1138 = vsub.f32 1.0, %v1108
        %1140 = vset.pattern.permute.xlu0 0
        %1141 = vperm.xlu0 %1140, %v1138
        %v1142 = vpop.permute.xlu0 %1141
        %v1144 = vmul.f32 %v1142, %v923
        %v1145 = vadd.f32 %v1137, %v1144
        %v1147 = vcombine.high %v1137, %v1137
        %v1149 = vunpack.c.l.s4 1966171168
        %v1150 = vunpack.c.0.s8 %v1149
        %v1151 = vlaneseq
        %v1152 = vshrl.u32 %v1151, 7
        %v1153 = vsub.s32 %v1150, %v1152
        %v1154 = vrot.slane %v1137, %v1153
        %v1156 = vunpack.c.l.s4 1966171168
        %v1157 = vunpack.c.0.s8 %v1156
        %v1158 = vlaneseq
        %v1159 = vshrl.u32 %v1158, 7
        %v1160 = vsub.s32 %v1157, %v1159
        %v1161 = vrot.slane %v1147, %v1160
        %v1162 = vcombine.high %v1154, %v1154
        %v1163 = vcombine.high %v1161, %v1161
        %v1165 = vunpack.c.l.s4 1966171168
        %v1166 = vunpack.c.0.s8 %v1165
        %v1167 = vlaneseq
        %v1168 = vshrl.u32 %v1167, 7
        %v1169 = vsub.s32 %v1166, %v1168
        %v1170 = vrot.slane %v1154, %v1169
        %v1172 = vunpack.c.l.s4 1966171168
        %v1173 = vunpack.c.0.s8 %v1172
        %v1174 = vlaneseq
        %v1175 = vshrl.u32 %v1174, 7
        %v1176 = vsub.s32 %v1173, %v1175
        %v1177 = vrot.slane %v1161, %v1176
        %v1179 = vunpack.c.l.s4 1966171168
        %v1180 = vunpack.c.0.s8 %v1179
        %v1181 = vlaneseq
        %v1182 = vshrl.u32 %v1181, 7
        %v1183 = vsub.s32 %v1180, %v1182
        %v1184 = vrot.slane %v1162, %v1183
        %v1186 = vunpack.c.l.s4 1966171168
        %v1187 = vunpack.c.0.s8 %v1186
        %v1188 = vlaneseq
        %v1189 = vshrl.u32 %v1188, 7
        %v1190 = vsub.s32 %v1187, %v1189
        %v1191 = vrot.slane %v1163, %v1190
        %v1192 = vcombine.high %v1170, %v1170
        %v1193 = vcombine.high %v1177, %v1177
        %v1194 = vcombine.high %v1184, %v1184
        %v1195 = vcombine.high %v1191, %v1191
        %1204 = vst.msk [vmem:[%s286 + $0x3] sm:$0x1] %vm537, %v1170
        %1205 = vst.msk [vmem:[%s286 + $0xb] sm:$0x1] %vm537, %v1184
        %1206 = vst.msk [vmem:[%s286 + $0x13] sm:$0x1] %vm537, %v1192
        %1207 = vst.msk [vmem:[%s286 + $0x1b] sm:$0x1] %vm537, %v1194
        %1208 = vst.msk [vmem:[%s286 + $0x23] sm:$0x1] %vm537, %v1177
        %1209 = vst.msk [vmem:[%s286 + $0x2b] sm:$0x1] %vm537, %v1191
        %1210 = vst.msk [vmem:[%s286 + $0x33] sm:$0x1] %vm537, %v1193
        %1211 = vst.msk [vmem:[%s286 + $0x3b] sm:$0x1] %vm537, %v1195
        %v1212 = vld [vmem:[%s263 + $0x4] sm:$0x1]
        %v1213 = vld [vmem:[%s263 + $0xc] sm:$0x1]
        %v1214 = vld [vmem:[%s263 + $0x14] sm:$0x1]
        %v1215 = vld [vmem:[%s263 + $0x1c] sm:$0x1]
        %v1216 = vld [vmem:[%s263 + $0x24] sm:$0x1]
        %v1217 = vld [vmem:[%s263 + $0x2c] sm:$0x1]
        %v1218 = vld [vmem:[%s263 + $0x34] sm:$0x1]
        %v1219 = vld [vmem:[%s263 + $0x3c] sm:$0x1]
        %v1221 = vsel %vm324, %v1145, 0
        %1223 = vmatprep.subr.mxu0 0.0
        %1224 = vmatpush1.msra.mxu0 %v310
        %1225 = vmatprep.subr.mxu0 0.0
        %1226 = vmatpush1.msra.mxu0 %v311
        %1227 = vmatprep.subr.mxu0 0.0
        %1228 = vmatpush1.msra.mxu0 %v312
        %1229 = vmatprep.subr.mxu0 0.0
        %1230 = vmatpush1.msra.mxu0 %v313
        %1231 = vmatprep.subr.mxu0 0.0
        %1232 = vmatpush1.msra.mxu0 0.0
        %1233 = vmatprep.subr.mxu0 0.0
        %1234 = vmatpush1.msra.mxu0 0.0
        %1235 = vmatprep.subr.mxu0 0.0
        %1236 = vmatpush1.msra.mxu0 0.0
        %1237 = vmatprep.subr.mxu0 0.0
        %1238 = vmatpush1.msra.mxu0 0.0
        %1239 = vmatprep.subr.mxu0 0.0
        %1240 = vmatpush1.msra.mxu0 0.0
        %1241 = vmatprep.subr.mxu0 0.0
        %1242 = vmatpush1.msra.mxu0 0.0
        %1243 = vmatprep.subr.mxu0 0.0
        %1244 = vmatpush1.msra.mxu0 0.0
        %1245 = vmatprep.subr.mxu0 0.0
        %1246 = vmatpush1.msra.mxu0 0.0
        %1247 = vmatprep.subr.mxu0 0.0
        %1248 = vmatpush1.msra.mxu0 0.0
        %1249 = vmatprep.subr.mxu0 0.0
        %1250 = vmatpush1.msra.mxu0 0.0
        %1251 = vmatprep.subr.mxu0 0.0
        %1252 = vmatpush1.msra.mxu0 0.0
        %1253 = vmatprep.subr.mxu0 0.0
        %1254 = vmatpush1.msra.mxu0 0.0
        %1255 = vmatprep.subr.mxu0 0.0
        %1256 = vmatpush1.msra.mxu0 0.0
        %1257 = vmatprep.subr.mxu0 0.0
        %1258 = vmatpush1.msra.mxu0 0.0
        %1259 = vmatprep.subr.mxu0 0.0
        %1260 = vmatpush1.msra.mxu0 0.0
        %1261 = vmatprep.subr.mxu0 0.0
        %1262 = vmatpush1.msra.mxu0 0.0
        %1263 = vmatprep.subr.mxu0 0.0
        %1264 = vmatpush1.msra.mxu0 0.0
        %1265 = vmatprep.subr.mxu0 0.0
        %1266 = vmatpush1.msra.mxu0 0.0
        %1267 = vmatprep.subr.mxu0 0.0
        %1268 = vmatpush1.msra.mxu0 0.0
        %1269 = vmatprep.subr.mxu0 0.0
        %1270 = vmatpush1.msra.mxu0 0.0
        %1271 = vmatprep.subr.mxu0 0.0
        %1272 = vmatpush1.msra.mxu0 0.0
        %1273 = vmatprep.subr.mxu0 0.0
        %1274 = vmatpush1.msra.mxu0 0.0
        %1275 = vmatprep.subr.mxu0 0.0
        %1276 = vmatpush1.msra.mxu0 0.0
        %1277 = vmatprep.subr.mxu0 0.0
        %1278 = vmatpush1.msra.mxu0 0.0
        %1279 = vmatprep.subr.mxu0 0.0
        %1280 = vmatpush1.msra.mxu0 0.0
        %1281 = vmatprep.subr.mxu0 0.0
        %1282 = vmatpush1.msra.mxu0 0.0
        %1283 = vmatprep.subr.mxu0 0.0
        %1284 = vmatpush1.msra.mxu0 0.0
        %1285 = vmatprep.subr.mxu0 0.0
        %1286 = vmatpush1.msra.mxu0 0.0
        %1287 = vmatprep.mubr.f32.mxu0 0.0
        %1288 = vmatmul.mubr.f32.gmra.mrb[0].mxu0 %v1221
        %v1289 = vpop.f32.mrb[0].mxu0
        %v1290 = vadd.f32 0.0, %v1289
        %v1291 = vpop.f32.mrb[0].mxu0
        %1292 = vdwg.mxu0
        %v1294 = vrot.slane %v1290, 1
        %v1295 = vrot.slane %v1290, 2
        %v1296 = vrot.slane %v1290, 3
        %v1297 = vrot.slane %v1290, 4
        %v1298 = vrot.slane %v1290, 5
        %v1299 = vrot.slane %v1290, 6
        %v1300 = vrot.slane %v1290, 7
        %v1309 = vadd.f32 %v1212, %v1290
        %v1310 = vadd.f32 %v1213, %v1294
        %v1311 = vadd.f32 %v1214, %v1295
        %v1312 = vadd.f32 %v1215, %v1296
        %v1313 = vadd.f32 %v1216, %v1297
        %v1314 = vadd.f32 %v1217, %v1298
        %v1315 = vadd.f32 %v1218, %v1299
        %v1316 = vadd.f32 %v1219, %v1300
        %v1317 = vtanh.pop %v1309
        %v1318 = vtanh.pop %v1310
        %v1319 = vtanh.pop %v1311
        %v1320 = vtanh.pop %v1312
        %v1321 = vtanh.pop %v1313
        %v1322 = vtanh.pop %v1314
        %v1323 = vtanh.pop %v1315
        %v1324 = vtanh.pop %v1316
        %s1325 = sadd.s32 %s315, 4
        %s1326 = scvt.s32.f32 %s1325
        %v1327 = vstv %s1326
        %vm1328 = vcmp.gt.f32.partialorder %v314, %v1327
        %v1329 = vsel %vm1328, 1, 0
        %v1330 = vcvt.s32.f32 %v1329
        %1332 = vset.pattern.permute.xlu0 0
        %1333 = vperm.xlu0 %1332, %v1330
        %v1334 = vpop.permute.xlu0 %1333
        %v1344 = vrot.slane %v1318, 7
        %v1345 = vsel %vm449, %v1344, %v1317
        %v1346 = vrot.slane %v1319, 6
        %v1347 = vsel %vm452, %v1346, %v1345
        %v1348 = vrot.slane %v1320, 5
        %v1349 = vsel %vm455, %v1348, %v1347
        %v1350 = vrot.slane %v1321, 4
        %v1351 = vsel %vm458, %v1350, %v1349
        %v1352 = vrot.slane %v1322, 3
        %v1353 = vsel %vm461, %v1352, %v1351
        %v1354 = vrot.slane %v1323, 2
        %v1355 = vsel %vm464, %v1354, %v1353
        %v1356 = vrot.slane %v1324, 1
        %v1357 = vsel %vm467, %v1356, %v1355
        %v1359 = vmul.f32 %v1334, %v1357
        %v1360 = vsub.f32 1.0, %v1330
        %1362 = vset.pattern.permute.xlu0 0
        %1363 = vperm.xlu0 %1362, %v1360
        %v1364 = vpop.permute.xlu0 %1363
        %v1366 = vmul.f32 %v1364, %v1145
        %v1367 = vadd.f32 %v1359, %v1366
        %v1369 = vcombine.high %v1359, %v1359
        %v1371 = vunpack.c.l.s4 1966171168
        %v1372 = vunpack.c.0.s8 %v1371
        %v1373 = vlaneseq
        %v1374 = vshrl.u32 %v1373, 7
        %v1375 = vsub.s32 %v1372, %v1374
        %v1376 = vrot.slane %v1359, %v1375
        %v1378 = vunpack.c.l.s4 1966171168
        %v1379 = vunpack.c.0.s8 %v1378
        %v1380 = vlaneseq
        %v1381 = vshrl.u32 %v1380, 7
        %v1382 = vsub.s32 %v1379, %v1381
        %v1383 = vrot.slane %v1369, %v1382
        %v1384 = vcombine.high %v1376, %v1376
        %v1385 = vcombine.high %v1383, %v1383
        %v1387 = vunpack.c.l.s4 1966171168
        %v1388 = vunpack.c.0.s8 %v1387
        %v1389 = vlaneseq
        %v1390 = vshrl.u32 %v1389, 7
        %v1391 = vsub.s32 %v1388, %v1390
        %v1392 = vrot.slane %v1376, %v1391
        %v1394 = vunpack.c.l.s4 1966171168
        %v1395 = vunpack.c.0.s8 %v1394
        %v1396 = vlaneseq
        %v1397 = vshrl.u32 %v1396, 7
        %v1398 = vsub.s32 %v1395, %v1397
        %v1399 = vrot.slane %v1383, %v1398
        %v1401 = vunpack.c.l.s4 1966171168
        %v1402 = vunpack.c.0.s8 %v1401
        %v1403 = vlaneseq
        %v1404 = vshrl.u32 %v1403, 7
        %v1405 = vsub.s32 %v1402, %v1404
        %v1406 = vrot.slane %v1384, %v1405
        %v1408 = vunpack.c.l.s4 1966171168
        %v1409 = vunpack.c.0.s8 %v1408
        %v1410 = vlaneseq
        %v1411 = vshrl.u32 %v1410, 7
        %v1412 = vsub.s32 %v1409, %v1411
        %v1413 = vrot.slane %v1385, %v1412
        %v1414 = vcombine.high %v1392, %v1392
        %v1415 = vcombine.high %v1399, %v1399
        %v1416 = vcombine.high %v1406, %v1406
        %v1417 = vcombine.high %v1413, %v1413
        %1426 = vst.msk [vmem:[%s286 + $0x4] sm:$0x1] %vm537, %v1392
        %1427 = vst.msk [vmem:[%s286 + $0xc] sm:$0x1] %vm537, %v1406
        %1428 = vst.msk [vmem:[%s286 + $0x14] sm:$0x1] %vm537, %v1414
        %1429 = vst.msk [vmem:[%s286 + $0x1c] sm:$0x1] %vm537, %v1416
        %1430 = vst.msk [vmem:[%s286 + $0x24] sm:$0x1] %vm537, %v1399
        %1431 = vst.msk [vmem:[%s286 + $0x2c] sm:$0x1] %vm537, %v1413
        %1432 = vst.msk [vmem:[%s286 + $0x34] sm:$0x1] %vm537, %v1415
        %1433 = vst.msk [vmem:[%s286 + $0x3c] sm:$0x1] %vm537, %v1417
        %v1434 = vld [vmem:[%s263 + $0x5] sm:$0x1]
        %v1435 = vld [vmem:[%s263 + $0xd] sm:$0x1]
        %v1436 = vld [vmem:[%s263 + $0x15] sm:$0x1]
        %v1437 = vld [vmem:[%s263 + $0x1d] sm:$0x1]
        %v1438 = vld [vmem:[%s263 + $0x25] sm:$0x1]
        %v1439 = vld [vmem:[%s263 + $0x2d] sm:$0x1]
        %v1440 = vld [vmem:[%s263 + $0x35] sm:$0x1]
        %v1441 = vld [vmem:[%s263 + $0x3d] sm:$0x1]
        %v1443 = vsel %vm324, %v1367, 0
        %1445 = vmatprep.subr.mxu0 0.0
        %1446 = vmatpush1.msra.mxu0 %v310
        %1447 = vmatprep.subr.mxu0 0.0
        %1448 = vmatpush1.msra.mxu0 %v311
        %1449 = vmatprep.subr.mxu0 0.0
        %1450 = vmatpush1.msra.mxu0 %v312
        %1451 = vmatprep.subr.mxu0 0.0
        %1452 = vmatpush1.msra.mxu0 %v313
        %1453 = vmatprep.subr.mxu0 0.0
        %1454 = vmatpush1.msra.mxu0 0.0
        %1455 = vmatprep.subr.mxu0 0.0
        %1456 = vmatpush1.msra.mxu0 0.0
        %1457 = vmatprep.subr.mxu0 0.0
        %1458 = vmatpush1.msra.mxu0 0.0
        %1459 = vmatprep.subr.mxu0 0.0
        %1460 = vmatpush1.msra.mxu0 0.0
        %1461 = vmatprep.subr.mxu0 0.0
        %1462 = vmatpush1.msra.mxu0 0.0
        %1463 = vmatprep.subr.mxu0 0.0
        %1464 = vmatpush1.msra.mxu0 0.0
        %1465 = vmatprep.subr.mxu0 0.0
        %1466 = vmatpush1.msra.mxu0 0.0
        %1467 = vmatprep.subr.mxu0 0.0
        %1468 = vmatpush1.msra.mxu0 0.0
        %1469 = vmatprep.subr.mxu0 0.0
        %1470 = vmatpush1.msra.mxu0 0.0
        %1471 = vmatprep.subr.mxu0 0.0
        %1472 = vmatpush1.msra.mxu0 0.0
        %1473 = vmatprep.subr.mxu0 0.0
        %1474 = vmatpush1.msra.mxu0 0.0
        %1475 = vmatprep.subr.mxu0 0.0
        %1476 = vmatpush1.msra.mxu0 0.0
        %1477 = vmatprep.subr.mxu0 0.0
        %1478 = vmatpush1.msra.mxu0 0.0
        %1479 = vmatprep.subr.mxu0 0.0
        %1480 = vmatpush1.msra.mxu0 0.0
        %1481 = vmatprep.subr.mxu0 0.0
        %1482 = vmatpush1.msra.mxu0 0.0
        %1483 = vmatprep.subr.mxu0 0.0
        %1484 = vmatpush1.msra.mxu0 0.0
        %1485 = vmatprep.subr.mxu0 0.0
        %1486 = vmatpush1.msra.mxu0 0.0
        %1487 = vmatprep.subr.mxu0 0.0
        %1488 = vmatpush1.msra.mxu0 0.0
        %1489 = vmatprep.subr.mxu0 0.0
        %1490 = vmatpush1.msra.mxu0 0.0
        %1491 = vmatprep.subr.mxu0 0.0
        %1492 = vmatpush1.msra.mxu0 0.0
        %1493 = vmatprep.subr.mxu0 0.0
        %1494 = vmatpush1.msra.mxu0 0.0
        %1495 = vmatprep.subr.mxu0 0.0
        %1496 = vmatpush1.msra.mxu0 0.0
        %1497 = vmatprep.subr.mxu0 0.0
        %1498 = vmatpush1.msra.mxu0 0.0
        %1499 = vmatprep.subr.mxu0 0.0
        %1500 = vmatpush1.msra.mxu0 0.0
        %1501 = vmatprep.subr.mxu0 0.0
        %1502 = vmatpush1.msra.mxu0 0.0
        %1503 = vmatprep.subr.mxu0 0.0
        %1504 = vmatpush1.msra.mxu0 0.0
        %1505 = vmatprep.subr.mxu0 0.0
        %1506 = vmatpush1.msra.mxu0 0.0
        %1507 = vmatprep.subr.mxu0 0.0
        %1508 = vmatpush1.msra.mxu0 0.0
        %1509 = vmatprep.mubr.f32.mxu0 0.0
        %1510 = vmatmul.mubr.f32.gmra.mrb[0].mxu0 %v1443
        %v1511 = vpop.f32.mrb[0].mxu0
        %v1512 = vadd.f32 0.0, %v1511
        %v1513 = vpop.f32.mrb[0].mxu0
        %1514 = vdwg.mxu0
        %v1516 = vrot.slane %v1512, 1
        %v1517 = vrot.slane %v1512, 2
        %v1518 = vrot.slane %v1512, 3
        %v1519 = vrot.slane %v1512, 4
        %v1520 = vrot.slane %v1512, 5
        %v1521 = vrot.slane %v1512, 6
        %v1522 = vrot.slane %v1512, 7
        %v1531 = vadd.f32 %v1434, %v1512
        %v1532 = vadd.f32 %v1435, %v1516
        %v1533 = vadd.f32 %v1436, %v1517
        %v1534 = vadd.f32 %v1437, %v1518
        %v1535 = vadd.f32 %v1438, %v1519
        %v1536 = vadd.f32 %v1439, %v1520
        %v1537 = vadd.f32 %v1440, %v1521
        %v1538 = vadd.f32 %v1441, %v1522
        %v1539 = vtanh.pop %v1531
        %v1540 = vtanh.pop %v1532
        %v1541 = vtanh.pop %v1533
        %v1542 = vtanh.pop %v1534
        %v1543 = vtanh.pop %v1535
        %v1544 = vtanh.pop %v1536
        %v1545 = vtanh.pop %v1537
        %v1546 = vtanh.pop %v1538
        %s1547 = sadd.s32 %s315, 5
        %s1548 = scvt.s32.f32 %s1547
        %v1549 = vstv %s1548
        %vm1550 = vcmp.gt.f32.partialorder %v314, %v1549
        %v1551 = vsel %vm1550, 1, 0
        %v1552 = vcvt.s32.f32 %v1551
        %1554 = vset.pattern.permute.xlu0 0
        %1555 = vperm.xlu0 %1554, %v1552
        %v1556 = vpop.permute.xlu0 %1555
        %v1566 = vrot.slane %v1540, 7
        %v1567 = vsel %vm449, %v1566, %v1539
        %v1568 = vrot.slane %v1541, 6
        %v1569 = vsel %vm452, %v1568, %v1567
        %v1570 = vrot.slane %v1542, 5
        %v1571 = vsel %vm455, %v1570, %v1569
        %v1572 = vrot.slane %v1543, 4
        %v1573 = vsel %vm458, %v1572, %v1571
        %v1574 = vrot.slane %v1544, 3
        %v1575 = vsel %vm461, %v1574, %v1573
        %v1576 = vrot.slane %v1545, 2
        %v1577 = vsel %vm464, %v1576, %v1575
        %v1578 = vrot.slane %v1546, 1
        %v1579 = vsel %vm467, %v1578, %v1577
        %v1581 = vmul.f32 %v1556, %v1579
        %v1582 = vsub.f32 1.0, %v1552
        %1584 = vset.pattern.permute.xlu0 0
        %1585 = vperm.xlu0 %1584, %v1582
        %v1586 = vpop.permute.xlu0 %1585
        %v1588 = vmul.f32 %v1586, %v1367
        %v1589 = vadd.f32 %v1581, %v1588
        %v1591 = vcombine.high %v1581, %v1581
        %v1593 = vunpack.c.l.s4 1966171168
        %v1594 = vunpack.c.0.s8 %v1593
        %v1595 = vlaneseq
        %v1596 = vshrl.u32 %v1595, 7
        %v1597 = vsub.s32 %v1594, %v1596
        %v1598 = vrot.slane %v1581, %v1597
        %v1600 = vunpack.c.l.s4 1966171168
        %v1601 = vunpack.c.0.s8 %v1600
        %v1602 = vlaneseq
        %v1603 = vshrl.u32 %v1602, 7
        %v1604 = vsub.s32 %v1601, %v1603
        %v1605 = vrot.slane %v1591, %v1604
        %v1606 = vcombine.high %v1598, %v1598
        %v1607 = vcombine.high %v1605, %v1605
        %v1609 = vunpack.c.l.s4 1966171168
        %v1610 = vunpack.c.0.s8 %v1609
        %v1611 = vlaneseq
        %v1612 = vshrl.u32 %v1611, 7
        %v1613 = vsub.s32 %v1610, %v1612
        %v1614 = vrot.slane %v1598, %v1613
        %v1616 = vunpack.c.l.s4 1966171168
        %v1617 = vunpack.c.0.s8 %v1616
        %v1618 = vlaneseq
        %v1619 = vshrl.u32 %v1618, 7
        %v1620 = vsub.s32 %v1617, %v1619
        %v1621 = vrot.slane %v1605, %v1620
        %v1623 = vunpack.c.l.s4 1966171168
        %v1624 = vunpack.c.0.s8 %v1623
        %v1625 = vlaneseq
        %v1626 = vshrl.u32 %v1625, 7
        %v1627 = vsub.s32 %v1624, %v1626
        %v1628 = vrot.slane %v1606, %v1627
        %v1630 = vunpack.c.l.s4 1966171168
        %v1631 = vunpack.c.0.s8 %v1630
        %v1632 = vlaneseq
        %v1633 = vshrl.u32 %v1632, 7
        %v1634 = vsub.s32 %v1631, %v1633
        %v1635 = vrot.slane %v1607, %v1634
        %v1636 = vcombine.high %v1614, %v1614
        %v1637 = vcombine.high %v1621, %v1621
        %v1638 = vcombine.high %v1628, %v1628
        %v1639 = vcombine.high %v1635, %v1635
        %1648 = vst.msk [vmem:[%s286 + $0x5] sm:$0x1] %vm537, %v1614
        %1649 = vst.msk [vmem:[%s286 + $0xd] sm:$0x1] %vm537, %v1628
        %1650 = vst.msk [vmem:[%s286 + $0x15] sm:$0x1] %vm537, %v1636
        %1651 = vst.msk [vmem:[%s286 + $0x1d] sm:$0x1] %vm537, %v1638
        %1652 = vst.msk [vmem:[%s286 + $0x25] sm:$0x1] %vm537, %v1621
        %1653 = vst.msk [vmem:[%s286 + $0x2d] sm:$0x1] %vm537, %v1635
        %1654 = vst.msk [vmem:[%s286 + $0x35] sm:$0x1] %vm537, %v1637
        %1655 = vst.msk [vmem:[%s286 + $0x3d] sm:$0x1] %vm537, %v1639
        %v1656 = vld [vmem:[%s263 + $0x6] sm:$0x1]
        %v1657 = vld [vmem:[%s263 + $0xe] sm:$0x1]
        %v1658 = vld [vmem:[%s263 + $0x16] sm:$0x1]
        %v1659 = vld [vmem:[%s263 + $0x1e] sm:$0x1]
        %v1660 = vld [vmem:[%s263 + $0x26] sm:$0x1]
        %v1661 = vld [vmem:[%s263 + $0x2e] sm:$0x1]
        %v1662 = vld [vmem:[%s263 + $0x36] sm:$0x1]
        %v1663 = vld [vmem:[%s263 + $0x3e] sm:$0x1]
        %v1665 = vsel %vm324, %v1589, 0
        %1667 = vmatprep.subr.mxu0 0.0
        %1668 = vmatpush1.msra.mxu0 %v310
        %1669 = vmatprep.subr.mxu0 0.0
        %1670 = vmatpush1.msra.mxu0 %v311
        %1671 = vmatprep.subr.mxu0 0.0
        %1672 = vmatpush1.msra.mxu0 %v312
        %1673 = vmatprep.subr.mxu0 0.0
        %1674 = vmatpush1.msra.mxu0 %v313
        %1675 = vmatprep.subr.mxu0 0.0
        %1676 = vmatpush1.msra.mxu0 0.0
        %1677 = vmatprep.subr.mxu0 0.0
        %1678 = vmatpush1.msra.mxu0 0.0
        %1679 = vmatprep.subr.mxu0 0.0
        %1680 = vmatpush1.msra.mxu0 0.0
        %1681 = vmatprep.subr.mxu0 0.0
        %1682 = vmatpush1.msra.mxu0 0.0
        %1683 = vmatprep.subr.mxu0 0.0
        %1684 = vmatpush1.msra.mxu0 0.0
        %1685 = vmatprep.subr.mxu0 0.0
        %1686 = vmatpush1.msra.mxu0 0.0
        %1687 = vmatprep.subr.mxu0 0.0
        %1688 = vmatpush1.msra.mxu0 0.0
        %1689 = vmatprep.subr.mxu0 0.0
        %1690 = vmatpush1.msra.mxu0 0.0
        %1691 = vmatprep.subr.mxu0 0.0
        %1692 = vmatpush1.msra.mxu0 0.0
        %1693 = vmatprep.subr.mxu0 0.0
        %1694 = vmatpush1.msra.mxu0 0.0
        %1695 = vmatprep.subr.mxu0 0.0
        %1696 = vmatpush1.msra.mxu0 0.0
        %1697 = vmatprep.subr.mxu0 0.0
        %1698 = vmatpush1.msra.mxu0 0.0
        %1699 = vmatprep.subr.mxu0 0.0
        %1700 = vmatpush1.msra.mxu0 0.0
        %1701 = vmatprep.subr.mxu0 0.0
        %1702 = vmatpush1.msra.mxu0 0.0
        %1703 = vmatprep.subr.mxu0 0.0
        %1704 = vmatpush1.msra.mxu0 0.0
        %1705 = vmatprep.subr.mxu0 0.0
        %1706 = vmatpush1.msra.mxu0 0.0
        %1707 = vmatprep.subr.mxu0 0.0
        %1708 = vmatpush1.msra.mxu0 0.0
        %1709 = vmatprep.subr.mxu0 0.0
        %1710 = vmatpush1.msra.mxu0 0.0
        %1711 = vmatprep.subr.mxu0 0.0
        %1712 = vmatpush1.msra.mxu0 0.0
        %1713 = vmatprep.subr.mxu0 0.0
        %1714 = vmatpush1.msra.mxu0 0.0
        %1715 = vmatprep.subr.mxu0 0.0
        %1716 = vmatpush1.msra.mxu0 0.0
        %1717 = vmatprep.subr.mxu0 0.0
        %1718 = vmatpush1.msra.mxu0 0.0
        %1719 = vmatprep.subr.mxu0 0.0
        %1720 = vmatpush1.msra.mxu0 0.0
        %1721 = vmatprep.subr.mxu0 0.0
        %1722 = vmatpush1.msra.mxu0 0.0
        %1723 = vmatprep.subr.mxu0 0.0
        %1724 = vmatpush1.msra.mxu0 0.0
        %1725 = vmatprep.subr.mxu0 0.0
        %1726 = vmatpush1.msra.mxu0 0.0
        %1727 = vmatprep.subr.mxu0 0.0
        %1728 = vmatpush1.msra.mxu0 0.0
        %1729 = vmatprep.subr.mxu0 0.0
        %1730 = vmatpush1.msra.mxu0 0.0
        %1731 = vmatprep.mubr.f32.mxu0 0.0
        %1732 = vmatmul.mubr.f32.gmra.mrb[0].mxu0 %v1665
        %v1733 = vpop.f32.mrb[0].mxu0
        %v1734 = vadd.f32 0.0, %v1733
        %v1735 = vpop.f32.mrb[0].mxu0
        %1736 = vdwg.mxu0
        %v1738 = vrot.slane %v1734, 1
        %v1739 = vrot.slane %v1734, 2
        %v1740 = vrot.slane %v1734, 3
        %v1741 = vrot.slane %v1734, 4
        %v1742 = vrot.slane %v1734, 5
        %v1743 = vrot.slane %v1734, 6
        %v1744 = vrot.slane %v1734, 7
        %v1753 = vadd.f32 %v1656, %v1734
        %v1754 = vadd.f32 %v1657, %v1738
        %v1755 = vadd.f32 %v1658, %v1739
        %v1756 = vadd.f32 %v1659, %v1740
        %v1757 = vadd.f32 %v1660, %v1741
        %v1758 = vadd.f32 %v1661, %v1742
        %v1759 = vadd.f32 %v1662, %v1743
        %v1760 = vadd.f32 %v1663, %v1744
        %v1761 = vtanh.pop %v1753
        %v1762 = vtanh.pop %v1754
        %v1763 = vtanh.pop %v1755
        %v1764 = vtanh.pop %v1756
        %v1765 = vtanh.pop %v1757
        %v1766 = vtanh.pop %v1758
        %v1767 = vtanh.pop %v1759
        %v1768 = vtanh.pop %v1760
        %s1769 = sadd.s32 %s315, 6
        %s1770 = scvt.s32.f32 %s1769
        %v1771 = vstv %s1770
        %vm1772 = vcmp.gt.f32.partialorder %v314, %v1771
        %v1773 = vsel %vm1772, 1, 0
        %v1774 = vcvt.s32.f32 %v1773
        %1776 = vset.pattern.permute.xlu0 0
        %1777 = vperm.xlu0 %1776, %v1774
        %v1778 = vpop.permute.xlu0 %1777
        %v1788 = vrot.slane %v1762, 7
        %v1789 = vsel %vm449, %v1788, %v1761
        %v1790 = vrot.slane %v1763, 6
        %v1791 = vsel %vm452, %v1790, %v1789
        %v1792 = vrot.slane %v1764, 5
        %v1793 = vsel %vm455, %v1792, %v1791
        %v1794 = vrot.slane %v1765, 4
        %v1795 = vsel %vm458, %v1794, %v1793
        %v1796 = vrot.slane %v1766, 3
        %v1797 = vsel %vm461, %v1796, %v1795
        %v1798 = vrot.slane %v1767, 2
        %v1799 = vsel %vm464, %v1798, %v1797
        %v1800 = vrot.slane %v1768, 1
        %v1801 = vsel %vm467, %v1800, %v1799
        %v1803 = vmul.f32 %v1778, %v1801
        %v1804 = vsub.f32 1.0, %v1774
        %1806 = vset.pattern.permute.xlu0 0
        %1807 = vperm.xlu0 %1806, %v1804
        %v1808 = vpop.permute.xlu0 %1807
        %v1810 = vmul.f32 %v1808, %v1589
        %v1811 = vadd.f32 %v1803, %v1810
        %v1813 = vcombine.high %v1803, %v1803
        %v1815 = vunpack.c.l.s4 1966171168
        %v1816 = vunpack.c.0.s8 %v1815
        %v1817 = vlaneseq
        %v1818 = vshrl.u32 %v1817, 7
        %v1819 = vsub.s32 %v1816, %v1818
        %v1820 = vrot.slane %v1803, %v1819
        %v1822 = vunpack.c.l.s4 1966171168
        %v1823 = vunpack.c.0.s8 %v1822
        %v1824 = vlaneseq
        %v1825 = vshrl.u32 %v1824, 7
        %v1826 = vsub.s32 %v1823, %v1825
        %v1827 = vrot.slane %v1813, %v1826
        %v1828 = vcombine.high %v1820, %v1820
        %v1829 = vcombine.high %v1827, %v1827
        %v1831 = vunpack.c.l.s4 1966171168
        %v1832 = vunpack.c.0.s8 %v1831
        %v1833 = vlaneseq
        %v1834 = vshrl.u32 %v1833, 7
        %v1835 = vsub.s32 %v1832, %v1834
        %v1836 = vrot.slane %v1820, %v1835
        %v1838 = vunpack.c.l.s4 1966171168
        %v1839 = vunpack.c.0.s8 %v1838
        %v1840 = vlaneseq
        %v1841 = vshrl.u32 %v1840, 7
        %v1842 = vsub.s32 %v1839, %v1841
        %v1843 = vrot.slane %v1827, %v1842
        %v1845 = vunpack.c.l.s4 1966171168
        %v1846 = vunpack.c.0.s8 %v1845
        %v1847 = vlaneseq
        %v1848 = vshrl.u32 %v1847, 7
        %v1849 = vsub.s32 %v1846, %v1848
        %v1850 = vrot.slane %v1828, %v1849
        %v1852 = vunpack.c.l.s4 1966171168
        %v1853 = vunpack.c.0.s8 %v1852
        %v1854 = vlaneseq
        %v1855 = vshrl.u32 %v1854, 7
        %v1856 = vsub.s32 %v1853, %v1855
        %v1857 = vrot.slane %v1829, %v1856
        %v1858 = vcombine.high %v1836, %v1836
        %v1859 = vcombine.high %v1843, %v1843
        %v1860 = vcombine.high %v1850, %v1850
        %v1861 = vcombine.high %v1857, %v1857
        %1870 = vst.msk [vmem:[%s286 + $0x6] sm:$0x1] %vm537, %v1836
        %1871 = vst.msk [vmem:[%s286 + $0xe] sm:$0x1] %vm537, %v1850
        %1872 = vst.msk [vmem:[%s286 + $0x16] sm:$0x1] %vm537, %v1858
        %1873 = vst.msk [vmem:[%s286 + $0x1e] sm:$0x1] %vm537, %v1860
        %1874 = vst.msk [vmem:[%s286 + $0x26] sm:$0x1] %vm537, %v1843
        %1875 = vst.msk [vmem:[%s286 + $0x2e] sm:$0x1] %vm537, %v1857
        %1876 = vst.msk [vmem:[%s286 + $0x36] sm:$0x1] %vm537, %v1859
        %1877 = vst.msk [vmem:[%s286 + $0x3e] sm:$0x1] %vm537, %v1861
        %v1878 = vld [vmem:[%s263 + $0x7] sm:$0x1]
        %v1879 = vld [vmem:[%s263 + $0xf] sm:$0x1]
        %v1880 = vld [vmem:[%s263 + $0x17] sm:$0x1]
        %v1881 = vld [vmem:[%s263 + $0x1f] sm:$0x1]
        %v1882 = vld [vmem:[%s263 + $0x27] sm:$0x1]
        %v1883 = vld [vmem:[%s263 + $0x2f] sm:$0x1]
        %v1884 = vld [vmem:[%s263 + $0x37] sm:$0x1]
        %v1885 = vld [vmem:[%s263 + $0x3f] sm:$0x1]
        %v1887 = vsel %vm324, %v1811, 0
        %1889 = vmatprep.subr.mxu0 0.0
        %1890 = vmatpush1.msra.mxu0 %v310
        %1891 = vmatprep.subr.mxu0 0.0
        %1892 = vmatpush1.msra.mxu0 %v311
        %1893 = vmatprep.subr.mxu0 0.0
        %1894 = vmatpush1.msra.mxu0 %v312
        %1895 = vmatprep.subr.mxu0 0.0
        %1896 = vmatpush1.msra.mxu0 %v313
        %1897 = vmatprep.subr.mxu0 0.0
        %1898 = vmatpush1.msra.mxu0 0.0
        %1899 = vmatprep.subr.mxu0 0.0
        %1900 = vmatpush1.msra.mxu0 0.0
        %1901 = vmatprep.subr.mxu0 0.0
        %1902 = vmatpush1.msra.mxu0 0.0
        %1903 = vmatprep.subr.mxu0 0.0
        %1904 = vmatpush1.msra.mxu0 0.0
        %1905 = vmatprep.subr.mxu0 0.0
        %1906 = vmatpush1.msra.mxu0 0.0
        %1907 = vmatprep.subr.mxu0 0.0
        %1908 = vmatpush1.msra.mxu0 0.0
        %1909 = vmatprep.subr.mxu0 0.0
        %1910 = vmatpush1.msra.mxu0 0.0
        %1911 = vmatprep.subr.mxu0 0.0
        %1912 = vmatpush1.msra.mxu0 0.0
        %1913 = vmatprep.subr.mxu0 0.0
        %1914 = vmatpush1.msra.mxu0 0.0
        %1915 = vmatprep.subr.mxu0 0.0
        %1916 = vmatpush1.msra.mxu0 0.0
        %1917 = vmatprep.subr.mxu0 0.0
        %1918 = vmatpush1.msra.mxu0 0.0
        %1919 = vmatprep.subr.mxu0 0.0
        %1920 = vmatpush1.msra.mxu0 0.0
        %1921 = vmatprep.subr.mxu0 0.0
        %1922 = vmatpush1.msra.mxu0 0.0
        %1923 = vmatprep.subr.mxu0 0.0
        %1924 = vmatpush1.msra.mxu0 0.0
        %1925 = vmatprep.subr.mxu0 0.0
        %1926 = vmatpush1.msra.mxu0 0.0
        %1927 = vmatprep.subr.mxu0 0.0
        %1928 = vmatpush1.msra.mxu0 0.0
        %1929 = vmatprep.subr.mxu0 0.0
        %1930 = vmatpush1.msra.mxu0 0.0
        %1931 = vmatprep.subr.mxu0 0.0
        %1932 = vmatpush1.msra.mxu0 0.0
        %1933 = vmatprep.subr.mxu0 0.0
        %1934 = vmatpush1.msra.mxu0 0.0
        %1935 = vmatprep.subr.mxu0 0.0
        %1936 = vmatpush1.msra.mxu0 0.0
        %1937 = vmatprep.subr.mxu0 0.0
        %1938 = vmatpush1.msra.mxu0 0.0
        %1939 = vmatprep.subr.mxu0 0.0
        %1940 = vmatpush1.msra.mxu0 0.0
        %1941 = vmatprep.subr.mxu0 0.0
        %1942 = vmatpush1.msra.mxu0 0.0
        %1943 = vmatprep.subr.mxu0 0.0
        %1944 = vmatpush1.msra.mxu0 0.0
        %1945 = vmatprep.subr.mxu0 0.0
        %1946 = vmatpush1.msra.mxu0 0.0
        %1947 = vmatprep.subr.mxu0 0.0
        %1948 = vmatpush1.msra.mxu0 0.0
        %1949 = vmatprep.subr.mxu0 0.0
        %1950 = vmatpush1.msra.mxu0 0.0
        %1951 = vmatprep.subr.mxu0 0.0
        %1952 = vmatpush1.msra.mxu0 0.0
        %1953 = vmatprep.mubr.f32.mxu0 0.0
        %1954 = vmatmul.mubr.f32.gmra.mrb[0].mxu0 %v1887
        %v1955 = vpop.f32.mrb[0].mxu0
        %v1956 = vadd.f32 0.0, %v1955
        %v1957 = vpop.f32.mrb[0].mxu0
        %1958 = vdwg.mxu0
        %v1960 = vrot.slane %v1956, 1
        %v1961 = vrot.slane %v1956, 2
        %v1962 = vrot.slane %v1956, 3
        %v1963 = vrot.slane %v1956, 4
        %v1964 = vrot.slane %v1956, 5
        %v1965 = vrot.slane %v1956, 6
        %v1966 = vrot.slane %v1956, 7
        %v1975 = vadd.f32 %v1878, %v1956
        %v1976 = vadd.f32 %v1879, %v1960
        %v1977 = vadd.f32 %v1880, %v1961
        %v1978 = vadd.f32 %v1881, %v1962
        %v1979 = vadd.f32 %v1882, %v1963
        %v1980 = vadd.f32 %v1883, %v1964
        %v1981 = vadd.f32 %v1884, %v1965
        %v1982 = vadd.f32 %v1885, %v1966
        %v1983 = vtanh.pop %v1975
        %v1984 = vtanh.pop %v1976
        %v1985 = vtanh.pop %v1977
        %v1986 = vtanh.pop %v1978
        %v1987 = vtanh.pop %v1979
        %v1988 = vtanh.pop %v1980
        %v1989 = vtanh.pop %v1981
        %v1990 = vtanh.pop %v1982
        %s1991 = sadd.s32 %s315, 7
        %s1992 = scvt.s32.f32 %s1991
        %v1993 = vstv %s1992
        %vm1994 = vcmp.gt.f32.partialorder %v314, %v1993
        %v1995 = vsel %vm1994, 1, 0
        %v1996 = vcvt.s32.f32 %v1995
        %1998 = vset.pattern.permute.xlu0 0
        %1999 = vperm.xlu0 %1998, %v1996
        %v2000 = vpop.permute.xlu0 %1999
        %v2010 = vrot.slane %v1984, 7
        %v2011 = vsel %vm449, %v2010, %v1983
        %v2012 = vrot.slane %v1985, 6
        %v2013 = vsel %vm452, %v2012, %v2011
        %v2014 = vrot.slane %v1986, 5
        %v2015 = vsel %vm455, %v2014, %v2013
        %v2016 = vrot.slane %v1987, 4
        %v2017 = vsel %vm458, %v2016, %v2015
        %v2018 = vrot.slane %v1988, 3
        %v2019 = vsel %vm461, %v2018, %v2017
        %v2020 = vrot.slane %v1989, 2
        %v2021 = vsel %vm464, %v2020, %v2019
        %v2022 = vrot.slane %v1990, 1
        %v2023 = vsel %vm467, %v2022, %v2021
        %v2025 = vmul.f32 %v2000, %v2023
        %v2026 = vsub.f32 1.0, %v1996
        %2028 = vset.pattern.permute.xlu0 0
        %2029 = vperm.xlu0 %2028, %v2026
        %v2030 = vpop.permute.xlu0 %2029
        %v2032 = vmul.f32 %v2030, %v1811
        %v2033 = vadd.f32 %v2025, %v2032
        %v2035 = vcombine.high %v2025, %v2025
        %v2037 = vunpack.c.l.s4 1966171168
        %v2038 = vunpack.c.0.s8 %v2037
        %v2039 = vlaneseq
        %v2040 = vshrl.u32 %v2039, 7
        %v2041 = vsub.s32 %v2038, %v2040
        %v2042 = vrot.slane %v2025, %v2041
        %v2044 = vunpack.c.l.s4 1966171168
        %v2045 = vunpack.c.0.s8 %v2044
        %v2046 = vlaneseq
        %v2047 = vshrl.u32 %v2046, 7
        %v2048 = vsub.s32 %v2045, %v2047
        %v2049 = vrot.slane %v2035, %v2048
        %v2050 = vcombine.high %v2042, %v2042
        %v2051 = vcombine.high %v2049, %v2049
        %v2053 = vunpack.c.l.s4 1966171168
        %v2054 = vunpack.c.0.s8 %v2053
        %v2055 = vlaneseq
        %v2056 = vshrl.u32 %v2055, 7
        %v2057 = vsub.s32 %v2054, %v2056
        %v2058 = vrot.slane %v2042, %v2057
        %v2060 = vunpack.c.l.s4 1966171168
        %v2061 = vunpack.c.0.s8 %v2060
        %v2062 = vlaneseq
        %v2063 = vshrl.u32 %v2062, 7
        %v2064 = vsub.s32 %v2061, %v2063
        %v2065 = vrot.slane %v2049, %v2064
        %v2067 = vunpack.c.l.s4 1966171168
        %v2068 = vunpack.c.0.s8 %v2067
        %v2069 = vlaneseq
        %v2070 = vshrl.u32 %v2069, 7
        %v2071 = vsub.s32 %v2068, %v2070
        %v2072 = vrot.slane %v2050, %v2071
        %v2074 = vunpack.c.l.s4 1966171168
        %v2075 = vunpack.c.0.s8 %v2074
        %v2076 = vlaneseq
        %v2077 = vshrl.u32 %v2076, 7
        %v2078 = vsub.s32 %v2075, %v2077
        %v2079 = vrot.slane %v2051, %v2078
        %v2080 = vcombine.high %v2058, %v2058
        %v2081 = vcombine.high %v2065, %v2065
        %v2082 = vcombine.high %v2072, %v2072
        %v2083 = vcombine.high %v2079, %v2079
        %2092 = vst.msk [vmem:[%s286 + $0x7] sm:$0x1] %vm537, %v2058
        %2093 = vst.msk [vmem:[%s286 + $0xf] sm:$0x1] %vm537, %v2072
        %2094 = vst.msk [vmem:[%s286 + $0x17] sm:$0x1] %vm537, %v2080
        %2095 = vst.msk [vmem:[%s286 + $0x1f] sm:$0x1] %vm537, %v2082
        %2096 = vst.msk [vmem:[%s286 + $0x27] sm:$0x1] %vm537, %v2065
        %2097 = vst.msk [vmem:[%s286 + $0x2f] sm:$0x1] %vm537, %v2079
        %2098 = vst.msk [vmem:[%s286 + $0x37] sm:$0x1] %vm537, %v2081
        %2099 = vst.msk [vmem:[%s286 + $0x3f] sm:$0x1] %vm537, %v2083
        %2100 = vst.msk [vmem:[#allocation2] sm:$0xff] %vm324, %v2033
        %p2101 = scmp.eq.s32.totalorder %s21, 3
        // Predicated region
        $region75: #{_masked_rnn_impl.1} parent=65 // pred_check
          %p2102 = pneg %p2101
        $region76: #{_masked_rnn_impl.1} parent=65 // pred_check_branch
          %2104 = sbr.rel (%p2102) target = $region78
        $region77: #{_masked_rnn_impl.1} parent=65 // pred_region
          %2105 = vst.msk [vmem:[%s302] sm:$0xff] %vm324, %v2033
        $region78: #{_masked_rnn_impl.1} parent=65 // pred_fallthru
          _
        %s2106 = sand.u32 %s113, 1
        %s2107 = sand.u32 %s113, 1
        %s2108 = smul.addr %s2107, 64
        %s2109 = scalar_lea.vmem [#allocation4], %s2108
        %p2110 = scmp.lt.s32.totalorder %s20, 0
        %s2111 = scalar_select %p2110, %s20, 0
        %s2112 = smul.addr %s2111, 8
        %s2113 = scalar_lea.vmem %s4, %s2112
        // Predicated region
        $region79: #{_masked_rnn_impl.1} parent=65 // pred_check
          %p2114 = pneg %p123
        $region80: #{_masked_rnn_impl.1} parent=65 // pred_check_branch
          %2116 = sbr.rel (%p2114) target = $region82
        $region81: #{_masked_rnn_impl.1} parent=65 // pred_region
          %s2117 = smul.u32 8, %s20
          %s2118 = smul.addr %s2117, 4
          %s2119 = sadd.s32 %s21, %s2118
          %s2120 = smul.addr %s2119, 8
          %s2121 = scalar_lea.vmem %s3, %s2120
          // Predicated region
          $region83: #{_masked_rnn_impl.1} parent=81 // pred_check
            _
          $region84: #{_masked_rnn_impl.1} parent=81 // pred_check_branch
            %2123 = sbr.rel (0) target = $region86
          $region85: #{_masked_rnn_impl.1} parent=81 // pred_region
            // Predicated region
            $region87: #{_masked_rnn_impl.1} parent=85 // pred_check
              _
            $region88: #{_masked_rnn_impl.1} parent=85 // pred_check_branch
              %2125 = sbr.rel (0) target = $region90
            $region89: #{_masked_rnn_impl.1} parent=85 // pred_region
              // Predicated region
              $region102: #{_masked_rnn_impl.1} parent=89 // pred_check
                _
              $region103: #{_masked_rnn_impl.1} parent=89 // pred_check_branch
                %2154 = sbr.rel (0) target = $region105
              $region104: #{_masked_rnn_impl.1} parent=89 // pred_region
                loop: start=0, step=1, limit=1
                $region106: #{_masked_rnn_impl.1} parent=104 // loop_pre_header
                  _
                $region107: #{_masked_rnn_impl.1} parent=104 // loop_header
                  %s2156 = sphi 0, %s2160
                  %p2157 = scmp.ge.s32.totalorder %s2156, 1
                  %s2161 = sphi %s2109, %s2109
                  %s2162 = sphi %s2121, %s2121
                $region108: #{_masked_rnn_impl.1} parent=104 // loop_header_branch
                  %2159 = sbr.rel (%p2157) target = $region112
                $region109: #{_masked_rnn_impl.1} parent=104 // loop_body
                  %v2163 = vld [vmem:[%s2161] sm:$0xff]
                  %2164 = vst [vmem:[%s2162] sm:$0xff] %v2163
                  %v2165 = vld [vmem:[%s2161 + $0x8] sm:$0xff]
                  %2166 = vst [vmem:[%s2162 + $0x20] sm:$0xff] %v2165
                  %v2167 = vld [vmem:[%s2161 + $0x10] sm:$0xff]
                  %2168 = vst [vmem:[%s2162 + $0x40] sm:$0xff] %v2167
                  %v2169 = vld [vmem:[%s2161 + $0x18] sm:$0xff]
                  %2170 = vst [vmem:[%s2162 + $0x60] sm:$0xff] %v2169
                  %v2171 = vld [vmem:[%s2161 + $0x20] sm:$0xff]
                  %2172 = vst [vmem:[%s2162 + $0x80] sm:$0xff] %v2171
                  %v2173 = vld [vmem:[%s2161 + $0x28] sm:$0xff]
                  %2174 = vst [vmem:[%s2162 + $0xa0] sm:$0xff] %v2173
                  %v2175 = vld [vmem:[%s2161 + $0x30] sm:$0xff]
                  %2176 = vst [vmem:[%s2162 + $0xc0] sm:$0xff] %v2175
                  %v2177 = vld [vmem:[%s2161 + $0x38] sm:$0xff]
                  %2178 = vst [vmem:[%s2162 + $0xe0] sm:$0xff] %v2177
                $region110: #{_masked_rnn_impl.1} parent=104 // loop_footer
                  %s2160 = sadd.s32 1, %s2156
                $region111: #{_masked_rnn_impl.1} parent=104 // loop_footer_branch
                  %2155 = sbr.rel target = $region107
                $region112: #{_masked_rnn_impl.1} parent=104 // loop_exit
                  _
              $region105: #{_masked_rnn_impl.1} parent=89 // pred_fallthru
                _
              // Predicated region
              $region113: #{_masked_rnn_impl.1} parent=89 // pred_check
                _
              $region114: #{_masked_rnn_impl.1} parent=89 // pred_check_branch
                %2180 = sbr.rel target = $region116
              $region115: #{_masked_rnn_impl.1} parent=89 // pred_region
                _
              $region116: #{_masked_rnn_impl.1} parent=89 // pred_fallthru
                _
            $region90: #{_masked_rnn_impl.1} parent=85 // pred_fallthru
              _
            // Predicated region
            $region91: #{_masked_rnn_impl.1} parent=85 // pred_check
              _
            $region92: #{_masked_rnn_impl.1} parent=85 // pred_check_branch
              %2127 = sbr.rel target = $region94
            $region93: #{_masked_rnn_impl.1} parent=85 // pred_region
              loop: start=0, step=1, limit=1
              $region95: #{_masked_rnn_impl.1} parent=93 // loop_pre_header
                _
              $region96: #{_masked_rnn_impl.1} parent=93 // loop_header
                %s2130 = sphi 0, %s2134
                %p2131 = scmp.ge.s32.totalorder %s2130, 1
                %s2135 = sphi %s2109, %s2109
                %s2136 = sphi %s2121, %s2121
              $region97: #{_masked_rnn_impl.1} parent=93 // loop_header_branch
                %2133 = sbr.rel (%p2131) target = $region101
              $region98: #{_masked_rnn_impl.1} parent=93 // loop_body
                %v2137 = vld [vmem:[%s2135] sm:$0xff]
                %2138 = vst [vmem:[%s2136] sm:$0xff] %v2137
                %v2139 = vld [vmem:[%s2135 + $0x8] sm:$0xff]
                %2140 = vst [vmem:[%s2136 + $0x20] sm:$0xff] %v2139
                %v2141 = vld [vmem:[%s2135 + $0x10] sm:$0xff]
                %2142 = vst [vmem:[%s2136 + $0x40] sm:$0xff] %v2141
                %v2143 = vld [vmem:[%s2135 + $0x18] sm:$0xff]
                %2144 = vst [vmem:[%s2136 + $0x60] sm:$0xff] %v2143
                %v2145 = vld [vmem:[%s2135 + $0x20] sm:$0xff]
                %2146 = vst [vmem:[%s2136 + $0x80] sm:$0xff] %v2145
                %v2147 = vld [vmem:[%s2135 + $0x28] sm:$0xff]
                %2148 = vst [vmem:[%s2136 + $0xa0] sm:$0xff] %v2147
                %v2149 = vld [vmem:[%s2135 + $0x30] sm:$0xff]
                %2150 = vst [vmem:[%s2136 + $0xc0] sm:$0xff] %v2149
                %v2151 = vld [vmem:[%s2135 + $0x38] sm:$0xff]
                %2152 = vst [vmem:[%s2136 + $0xe0] sm:$0xff] %v2151
              $region99: #{_masked_rnn_impl.1} parent=93 // loop_footer
                %s2134 = sadd.s32 1, %s2130
              $region100: #{_masked_rnn_impl.1} parent=93 // loop_footer_branch
                %2129 = sbr.rel target = $region96
              $region101: #{_masked_rnn_impl.1} parent=93 // loop_exit
                _
            $region94: #{_masked_rnn_impl.1} parent=85 // pred_fallthru
              _
          $region86: #{_masked_rnn_impl.1} parent=81 // pred_fallthru
            _
          %2181 = vnop
        $region82: #{_masked_rnn_impl.1} parent=65 // pred_fallthru
          _
        // Predicated region
        $region117: #{_masked_rnn_impl.1} parent=65 // pred_check
          %p2182 = pneg %p149
        $region118: #{_masked_rnn_impl.1} parent=65 // pred_check_branch
          %2184 = sbr.rel (%p2182) target = $region120
        $region119: #{_masked_rnn_impl.1} parent=65 // pred_region
          _
        $region120: #{_masked_rnn_impl.1} parent=65 // pred_fallthru
          _
        // Predicated region
        $region121: #{_masked_rnn_impl.1} parent=65 // pred_check
          %p2185 = pneg %p149
        $region122: #{_masked_rnn_impl.1} parent=65 // pred_check_branch
          %2187 = sbr.rel (%p2185) target = $region124
        $region123: #{_masked_rnn_impl.1} parent=65 // pred_region
          %p2188 = scmp.lt.s32.totalorder %s20, 0
          %s2189 = scalar_select %p2188, %s20, 0
          %s2190 = smul.addr %s2189, 8
          %s2191 = scalar_lea.vmem %s4, %s2190
        $region124: #{_masked_rnn_impl.1} parent=65 // pred_fallthru
          _
      $region66: #{_masked_rnn_impl.1} parent=5 // pred_fallthru
        _
      %p2192 = scmp.le.s32.totalorder 2, %s11
      // Predicated region
      $region125: #{_masked_rnn_impl.1} parent=5 // pred_check
        %p2193 = pneg %p2192
      $region126: #{_masked_rnn_impl.1} parent=5 // pred_check_branch
        %2195 = sbr.rel (%p2193) target = $region128
      $region127: #{_masked_rnn_impl.1} parent=5 // pred_region
        %s2196 = ssub.s32 %s11, 2
        // Predicated region
        $region129: #{_masked_rnn_impl.1} parent=127 // pred_check
          %p2197 = pneg %p129
        $region130: #{_masked_rnn_impl.1} parent=127 // pred_check_branch
          %2199 = sbr.rel (%p2197) target = $region132
        $region131: #{_masked_rnn_impl.1} parent=127 // pred_region
          %s2200 = sand.u32 %s114, 1
          %s2201 = sand.u32 %s114, 1
          %s2202 = smul.addr %s2201, 64
          %s2203 = scalar_lea.vmem [#allocation4], %s2202
        $region132: #{_masked_rnn_impl.1} parent=127 // pred_fallthru
          _
      $region128: #{_masked_rnn_impl.1} parent=5 // pred_fallthru
        _
    $region6: #{_masked_rnn_impl.1} parent=1 // loop_footer
      %s15 = sadd.s32 1, %s11
    $region7: #{_masked_rnn_impl.1} parent=1 // loop_footer_branch
      %10 = sbr.rel target = $region3
    $region8: #{_masked_rnn_impl.1} parent=1 // loop_exit
      _

</llo_original>
